<compile_context>
chip_gen: v5e
topology: v5e:2x2
jax: 0.10.0
libtpu: 0.0.40
codegen_flags: <defaults>
</compile_context>

<pallas_src>
import functools

import jax
import jax.numpy as jnp
from jax.experimental import pallas as pl
from jax.experimental.pallas import tpu as pltpu


def _round_up(x, m):
    return (x + m - 1) // m * m


def _cdiv(a, b):
    return (a + b - 1) // b


def _tpu_config():
    """Per-generation tile defaults and VMEM budgets (roofline-driven)."""
    kind = ""
    try:
        kind = jax.devices()[0].device_kind.lower()
    except Exception:
        pass
    if "v7" in kind or "7x" in kind:
        # 64 MiB VMEM / TensorCore, 2 TCs: keep footprint small, >= 2 M tiles.
        return dict(tm=256, tf=256, tf_mult=256,
                    vmem_cap=48 << 20, resident_budget=24 << 20, min_m_tiles=2)
    if "v6" in kind:
        # 128 MiB VMEM, ridge ~680 flop/B: big token tile to amortize weights.
        return dict(tm=1024, tf=512, tf_mult=256,
                    vmem_cap=112 << 20, resident_budget=64 << 20, min_m_tiles=1)
    if "v5" in kind:
        # 128 MiB VMEM, ridge ~240 flop/B.
        return dict(tm=512, tf=512, tf_mult=128,
                    vmem_cap=96 << 20, resident_budget=64 << 20, min_m_tiles=1)
    # Unknown backend: conservative.
    return dict(tm=256, tf=512, tf_mult=128,
                vmem_cap=48 << 20, resident_budget=24 << 20, min_m_tiles=1)


def _ffn_kernel_resident(x_ref, w1_ref, b1_ref, w2_ref, b2_ref, o_ref):
    # Single F step: weights resident, no accumulator needed.
    # x_ref: (TM, D) bf16; w1_ref: (D, F) bf16; w2_ref: (F, D) bf16; biases f32.
    h = jnp.dot(x_ref[...], w1_ref[...], preferred_element_type=jnp.float32)
    h = jnp.maximum(h + b1_ref[...], 0.0)
    # Dropout (p=0.1) is identity in eval mode.
    o_ref[...] = (jnp.dot(h.astype(w2_ref.dtype), w2_ref[...],
                          preferred_element_type=jnp.float32)
                  + b2_ref[...]).astype(o_ref.dtype)


def _ffn_kernel_tiled(x_ref, w1_ref, b1_ref, w2_ref, b2_ref, o_ref, acc_ref):
    # x_ref:  (TM, D)   bf16 token tile        (constant over the F axis)
    # w1_ref: (D,  TF)  bf16 first-linear slab (streams over F)
    # b1_ref: (1,  TF)  f32
    # w2_ref: (TF, D)   bf16 second-linear slab (streams over F)
    # b2_ref: (1,  D)   f32
    # o_ref:  (TM, D)   output tile (written once, at the last F step)
    # acc_ref:(TM, D)   f32 accumulator scratch
    f = pl.program_id(1)

    @pl.when(f == 0)
    def _():
        acc_ref[...] = jnp.zeros_like(acc_ref)

    h = jnp.dot(x_ref[...], w1_ref[...], preferred_element_type=jnp.float32)
    h = jnp.maximum(h + b1_ref[...], 0.0)
    # Dropout (p=0.1) is identity in eval mode.
    acc_ref[...] += jnp.dot(h.astype(w2_ref.dtype), w2_ref[...],
                            preferred_element_type=jnp.float32)

    @pl.when(f == pl.num_programs(1) - 1)
    def _():
        o_ref[...] = (acc_ref[...] + b2_ref[...]).astype(o_ref.dtype)


def feed_forward(x, w1, b1, w2, b2, *, tm=None, tf=None, out_dtype=None):
    """x: (B, S, D).  w1: (D, F), b1: (F,), w2: (F, D), b2: (D,).

    Weights may be f32 or already bf16 ("at rest"); MXU inputs are bf16 either
    way, accumulation is f32.
    """
    B, S, D = x.shape
    F = w1.shape[1]
    M = B * S
    out_dtype = x.dtype if out_dtype is None else out_dtype
    out_b = jnp.dtype(out_dtype).itemsize

    cfg = _tpu_config()
    if tm is None:
        tm = cfg["tm"]
    if tf is None:
        tf = cfg["tf"]
    tf_mult = cfg["tf_mult"]

    # --- Token tile: multiple of 128 preferred (16 min for bf16 sublanes). ---
    if M >= 128:
        tm = max(128, min(_round_up(tm, 128), _round_up(M, 128)))
        if cfg["min_m_tiles"] > 1:
            # Keep >= min_m_tiles tiles on the parallel axis so both v7x
            # TensorCores get work even when M is small.
            tm = min(tm, max(128, _round_up(_cdiv(M, cfg["min_m_tiles"]), 128)))
    else:
        tm = _round_up(max(M, 1), 16)
    M_pad = _round_up(M, tm)

    # --- Hidden tile: multiple of 256 on v6e/v7x, 128 on v5e. ---
    F_full = _round_up(F, tf_mult)
    tf = max(tf_mult, min(_round_up(tf, tf_mult), F_full))

    # Weight-resident fast path budget check (conservative: 2 buffers each).
    def resident_bytes(tm_):
        return (2 * (D * F_full * 2) * 2          # W1 + W2 bf16 buffers
                + 2 * tm_ * D * 2                 # x tile (double-buffered)
                + 2 * tm_ * D * out_b             # out tile (double-buffered)
                + tm_ * F_full * 4                # f32 hidden-activation temp
                + 2 * (F_full + D) * 4)           # biases

    # Tiled-path footprint (double-buffered tiles + h temp + f32 accumulator).
    def tiled_bytes(tm_, tf_):
        per_step = (2 * tm_ * D * 2 + 2 * D * tf_ * 2 + 2 * tf_ * D * 2
                    + 2 * tf_ * 4 + 2 * D * 4 + 2 * tm_ * D * out_b)
        return per_step + tm_ * tf_ * 4 + tm_ * D * 4

    single_f = resident_bytes(tm) * 5 // 4 <= cfg["resident_budget"]
    if single_f:
        tf = F_full
        F_pad = F_full
    else:
        # Shrink tiles if the streaming path would blow the per-chip VMEM cap.
        while tm > 128 and tiled_bytes(tm, tf) * 5 // 4 > cfg["vmem_cap"]:
            tm //= 2
        while tf > tf_mult and tiled_bytes(tm, tf) * 5 // 4 > cfg["vmem_cap"]:
            tf //= 2
        M_pad = _round_up(M, tm)
        F_pad = _round_up(F, tf)

    # Cast weights to bf16 *before* padding (no-op if already bf16 at rest).
    w1b = w1.astype(jnp.bfloat16)
    w2b = w2.astype(jnp.bfloat16)

    x2d = x.reshape(M, D).astype(jnp.bfloat16)
    if M_pad != M:
        x2d = jnp.pad(x2d, ((0, M_pad - M), (0, 0)))
    if F_pad != F:
        # Zero-padded hidden units: relu(x @ 0 + 0) = 0 and contribute nothing.
        w1b = jnp.pad(w1b, ((0, 0), (0, F_pad - F)))
        w2b = jnp.pad(w2b, ((0, F_pad - F), (0, 0)))
        b1 = jnp.pad(b1, (0, F_pad - F))
    b1_2d = b1.reshape(1, F_pad).astype(jnp.float32)
    b2_2d = b2.reshape(1, D).astype(jnp.float32)

    m_tiles = M_pad // tm
    f_tiles = F_pad // tf

    # Weights are fetched once when their index_map is constant over the grid
    # (single F step), otherwise once per M tile.
    w_reads = 1 if f_tiles == 1 else m_tiles
    cost = pl.CostEstimate(
        flops=4 * M_pad * D * F_pad,
        transcendentals=0,
        bytes_accessed=(M_pad * D * 2
                        + w_reads * (2 * D * F_pad * 2 + F_pad * 4 + D * 4)
                        + M_pad * D * out_b),
    )

    if f_tiles == 1:
        vmem_bytes = min(cfg["vmem_cap"],
                         max(resident_bytes(tm) * 5 // 4, 16 << 20))
        out2d = pl.pallas_call(
            _ffn_kernel_resident,
            out_shape=jax.ShapeDtypeStruct((M_pad, D), out_dtype),
            grid_spec=pltpu.PrefetchScalarGridSpec(
                num_scalar_prefetch=0,
                grid=(m_tiles,),
                in_specs=[
                    pl.BlockSpec((tm, D), lambda i: (i, 0)),      # x tile
                    pl.BlockSpec((D, F_pad), lambda i: (0, 0)),   # W1 (resident)
                    pl.BlockSpec((1, F_pad), lambda i: (0, 0)),   # b1
                    pl.BlockSpec((F_pad, D), lambda i: (0, 0)),   # W2 (resident)
                    pl.BlockSpec((1, D), lambda i: (0, 0)),       # b2
                ],
                out_specs=pl.BlockSpec((tm, D), lambda i: (i, 0)),
            ),
            compiler_params=pltpu.CompilerParams(
                dimension_semantics=("parallel",),
                vmem_limit_bytes=vmem_bytes,
            ),
            cost_estimate=cost,
        )(x2d, w1b, b1_2d, w2b, b2_2d)
    else:
        vmem_bytes = min(cfg["vmem_cap"],
                         max(tiled_bytes(tm, tf) * 5 // 4, 32 << 20))
        out2d = pl.pallas_call(
            _ffn_kernel_tiled,
            out_shape=jax.ShapeDtypeStruct((M_pad, D), out_dtype),
            grid_spec=pltpu.PrefetchScalarGridSpec(
                num_scalar_prefetch=0,
                grid=(m_tiles, f_tiles),
                in_specs=[
                    pl.BlockSpec((tm, D), lambda i, f: (i, 0)),   # x tile
                    pl.BlockSpec((D, tf), lambda i, f: (0, f)),   # W1 slab
                    pl.BlockSpec((1, tf), lambda i, f: (0, f)),   # b1 slab
                    pl.BlockSpec((tf, D), lambda i, f: (f, 0)),   # W2 slab
                    pl.BlockSpec((1, D), lambda i, f: (0, 0)),    # b2
                ],
                out_specs=pl.BlockSpec((tm, D), lambda i, f: (i, 0)),
                scratch_shapes=[pltpu.VMEM((tm, D), jnp.float32)],
            ),
            compiler_params=pltpu.CompilerParams(
                dimension_semantics=("parallel", "arbitrary"),
                vmem_limit_bytes=vmem_bytes,
            ),
            cost_estimate=cost,
        )(x2d, w1b, b1_2d, w2b, b2_2d)

    if M_pad != M:
        out2d = out2d[:M]
    return out2d.reshape(B, S, D)


def _init_params(key, d_model, d_ff):
    """Deterministic init matching nn.Linear's uniform(-1/sqrt(fan_in), ...)."""
    k1, k2, k3, k4 = jax.random.split(key, 4)
    lim1 = 1.0 / jnp.sqrt(jnp.float32(d_model))
    lim2 = 1.0 / jnp.sqrt(jnp.float32(d_ff))
    # Stored directly as (in, out) so the kernel does x @ W (== x @ W_pt.T).
    w1 = jax.random.uniform(k1, (d_model, d_ff), jnp.float32, -lim1, lim1)
    b1 = jax.random.uniform(k2, (d_ff,), jnp.float32, -lim1, lim1)
    w2 = jax.random.uniform(k3, (d_ff, d_model), jnp.float32, -lim2, lim2)
    b2 = jax.random.uniform(k4, (d_model,), jnp.float32, -lim2, lim2)
    return w1, b1, w2, b2


if __name__ == "__main__":
    # Small shapes consistent with the module (d_model scaled down, d_ff = 2*d_model).
    batch, seq, d_model, d_ff = 4, 64, 256, 512

    key = jax.random.PRNGKey(0)
    kx, kp = jax.random.split(key)
    x = jax.random.normal(kx, (batch, seq, d_model), jnp.float32)
    w1, b1, w2, b2 = _init_params(kp, d_model, d_ff)

    # Keep weights bf16 "at rest" so no per-call cast pass over them is needed.
    w1b16 = w1.astype(jnp.bfloat16)
    w2b16 = w2.astype(jnp.bfloat16)

    fn = jax.jit(feed_forward)
    out = jax.block_until_ready(fn(x, w1b16, b1, w2b16, b2))

    # Pure-JAX reference with the same bf16 MXU-input casts (f32 accumulate).
    xb = x.reshape(-1, d_model).astype(jnp.bfloat16)
    h = jnp.dot(xb, w1b16, preferred_element_type=jnp.float32) + b1
    h = jnp.maximum(h, 0.0)
    ref = jnp.dot(h.astype(jnp.bfloat16), w2b16,
                  preferred_element_type=jnp.float32) + b2
    ref = ref.reshape(batch, seq, d_model)

    assert out.shape == (batch, seq, d_model)
    assert jnp.allclose(out, ref, atol=2e-2, rtol=2e-2), float(jnp.max(jnp.abs(out - ref)))

    print("KERNEL_OK")
</pallas_src>

<mosaic_0001>
module attributes {stable_mosaic.version = 11 : i64} {
  func.func @_ffn_kernel_resident(%arg0: i32, %arg1: memref<256x256xbf16, #tpu.memory_space<vmem>>, %arg2: memref<256x512xbf16, #tpu.memory_space<vmem>>, %arg3: memref<1x512xf32, #tpu.memory_space<vmem>>, %arg4: memref<512x256xbf16, #tpu.memory_space<vmem>>, %arg5: memref<1x256xf32, #tpu.memory_space<vmem>>, %arg6: memref<256x256xf32, #tpu.memory_space<vmem>>) attributes {dimension_semantics = [#tpu.dimension_semantics<parallel>], iteration_bounds = array<i64: 1>, scalar_prefetch = 0 : i64, scratch_operands = 0 : i64, tpu.core_type = #tpu.core_type<tc>, window_params = [{transform_indices = @transform_0, window_bounds = array<i64: 256, 256>}, {pipeline_mode = #tpu.pipeline_mode<synchronous>, transform_indices = @transform_1, window_bounds = array<i64: 256, 512>}, {pipeline_mode = #tpu.pipeline_mode<synchronous>, transform_indices = @transform_2, window_bounds = array<i64: 1, 512>}, {pipeline_mode = #tpu.pipeline_mode<synchronous>, transform_indices = @transform_3, window_bounds = array<i64: 512, 256>}, {pipeline_mode = #tpu.pipeline_mode<synchronous>, transform_indices = @transform_4, window_bounds = array<i64: 1, 256>}, {transform_indices = @transform_5, window_bounds = array<i64: 256, 256>}]} {
    %c0 = arith.constant 0 : index
    %c0_0 = arith.constant 0 : index
    %0 = vector.load %arg1[%c0, %c0_0] : memref<256x256xbf16, #tpu.memory_space<vmem>>, vector<256x256xbf16>
    %c0_1 = arith.constant 0 : index
    %c0_2 = arith.constant 0 : index
    %1 = vector.load %arg2[%c0_1, %c0_2] : memref<256x512xbf16, #tpu.memory_space<vmem>>, vector<256x512xbf16>
    %cst = arith.constant dense<0.000000e+00> : vector<256x512xf32>
    %2 = tpu.matmul %0, %1, %cst {dimension_numbers = #tpu.dot_dimension_numbers<[1], [0], [0], [1], [0, 0, 1, 1], [], []>} : vector<256x256xbf16>, vector<256x512xbf16>, vector<256x512xf32> -> vector<256x512xf32>
    %c0_3 = arith.constant 0 : index
    %c0_4 = arith.constant 0 : index
    %3 = vector.load %arg3[%c0_3, %c0_4] : memref<1x512xf32, #tpu.memory_space<vmem>>, vector<1x512xf32>
    %4 = vector.broadcast %3 : vector<1x512xf32> to vector<256x512xf32>
    %5 = arith.addf %2, %4 : vector<256x512xf32>
    %cst_5 = arith.constant 0.000000e+00 : f32
    %6 = vector.broadcast %cst_5 : f32 to vector<256x512xf32>
    %7 = arith.maximumf %5, %6 : vector<256x512xf32>
    %8 = arith.truncf %7 : vector<256x512xf32> to vector<256x512xbf16>
    %c0_6 = arith.constant 0 : index
    %c0_7 = arith.constant 0 : index
    %9 = vector.load %arg4[%c0_6, %c0_7] : memref<512x256xbf16, #tpu.memory_space<vmem>>, vector<512x256xbf16>
    %cst_8 = arith.constant dense<0.000000e+00> : vector<256x256xf32>
    %10 = tpu.matmul %8, %9, %cst_8 {dimension_numbers = #tpu.dot_dimension_numbers<[1], [0], [0], [1], [0, 0, 1, 1], [], []>} : vector<256x512xbf16>, vector<512x256xbf16>, vector<256x256xf32> -> vector<256x256xf32>
    %c0_9 = arith.constant 0 : index
    %c0_10 = arith.constant 0 : index
    %11 = vector.load %arg5[%c0_9, %c0_10] : memref<1x256xf32, #tpu.memory_space<vmem>>, vector<1x256xf32>
    %12 = vector.broadcast %11 : vector<1x256xf32> to vector<256x256xf32>
    %13 = arith.addf %10, %12 : vector<256x256xf32>
    %c0_11 = arith.constant 0 : index
    %c0_12 = arith.constant 0 : index
    %14 = vector.load %arg6[%c0_11, %c0_12] : memref<256x256xf32, #tpu.memory_space<vmem>>, vector<256x256xf32>
    tpu.vector_store %arg6[%c0_11, %c0_12], %13 {strides = array<i32>} : memref<256x256xf32, #tpu.memory_space<vmem>>, vector<256x256xf32>,
    return
  }
  func.func @transform_0(%arg0: i32) -> (i32, i32) {
    %c0_i32 = arith.constant 0 : i32
    %c0_i32_0 = arith.constant 0 : i32
    return %arg0, %c0_i32 : i32, i32
  }
  func.func @transform_1(%arg0: i32) -> (i32, i32) {
    %c0_i32 = arith.constant 0 : i32
    %c0_i32_0 = arith.constant 0 : i32
    %c0_i32_1 = arith.constant 0 : i32
    return %c0_i32, %c0_i32_0 : i32, i32
  }
  func.func @transform_2(%arg0: i32) -> (i32, i32) {
    %c0_i32 = arith.constant 0 : i32
    %c0_i32_0 = arith.constant 0 : i32
    %c0_i32_1 = arith.constant 0 : i32
    return %c0_i32, %c0_i32_0 : i32, i32
  }
  func.func @transform_3(%arg0: i32) -> (i32, i32) {
    %c0_i32 = arith.constant 0 : i32
    %c0_i32_0 = arith.constant 0 : i32
    %c0_i32_1 = arith.constant 0 : i32
    return %c0_i32, %c0_i32_0 : i32, i32
  }
  func.func @transform_4(%arg0: i32) -> (i32, i32) {
    %c0_i32 = arith.constant 0 : i32
    %c0_i32_0 = arith.constant 0 : i32
    %c0_i32_1 = arith.constant 0 : i32
    return %c0_i32, %c0_i32_0 : i32, i32
  }
  func.func @transform_5(%arg0: i32) -> (i32, i32) {
    %c0_i32 = arith.constant 0 : i32
    %c0_i32_0 = arith.constant 0 : i32
    return %arg0, %c0_i32 : i32, i32
  }
}

</mosaic_0001>

<llo_original>
// kernel: feed_forward.1
$region0: #{feed_forward.1}
  #allocation0 [shape = 'u32[]', space=smem, size = 0x4, offset = 0x4, fixed_abs, tag = 'smem constant byte address 0x4 - core index']
  #allocation1 [shape = 'u32[72,128]{1,0:T(1,128)}', space=vmem, size = 0x9000, scoped, tag = 'internal scratch']
  %s0 = inlined_call_operand.vmem [shape: bf16[256,256], index: 0, kind: input, shape index: {}]
  %s1 = inlined_call_operand.vmem [shape: bf16[256,512], index: 1, kind: input, shape index: {}]
  %s2 = inlined_call_operand.vmem [shape: f32[1,512], index: 2, kind: input, shape index: {}]
  %s3 = inlined_call_operand.hbm [shape: bf16[512,256], index: 3, kind: input, shape index: {}]
  %s4 = inlined_call_operand.vmem [shape: f32[1,256], index: 4, kind: input, shape index: {}]
  %s5 = inlined_call_operand.hbm [shape: f32[256,256], index: 5, kind: output, shape index: {}]
  %s6 = sld [smem:[#allocation0]]
  $region34: #{feed_forward.1} parent=0
    _
  %s8 = ssub.s32 1, %s6
  %s9 = scalar_select 0, %s8, %s6
  $region1: #{feed_forward.1} parent=0
    #allocation2 [shape = 'u8[262144]{0}', space=vmem, size = 0x40000, scoped, tag = 'input window, operand 3, single buffered']
    #allocation3 [shape = 's32[1]{0}', space=sflag, size = 0x4, scoped, tag = 'scoped memory for feed_forward.1']
    #allocation4 [shape = 's32[1]{0}', space=sflag, size = 0x4, scoped, tag = 'scoped memory for feed_forward.1']
    #allocation5 [shape = 'u8[262144]{0}', space=vmem, size = 0x40000, scoped, tag = 'output window, operand 0, single buffered']
    %10 = vsyncpa [#allocation3], 0
    %11 = vsyncpa [#allocation4], 0
    // Predicated region
    $region2: #{feed_forward.1} parent=1 // pred_check
      _
    $region3: #{feed_forward.1} parent=1 // pred_check_branch
      %13 = sbr.rel (0) target = $region5
    $region4: #{feed_forward.1} parent=1 // pred_region
      _
    $region5: #{feed_forward.1} parent=1 // pred_fallthru
      _
    // Predicated region
    $region6: #{feed_forward.1} parent=1 // pred_check
      _
    $region7: #{feed_forward.1} parent=1 // pred_check_branch
      %15 = sbr.rel (0) target = $region9
    $region8: #{feed_forward.1} parent=1 // pred_region
      _
    $region9: #{feed_forward.1} parent=1 // pred_fallthru
      _
    // Predicated region
    $region10: #{feed_forward.1} parent=1 // pred_check
      _
    $region11: #{feed_forward.1} parent=1 // pred_check_branch
      %17 = sbr.rel (0) target = $region13
    $region12: #{feed_forward.1} parent=1 // pred_region
      _
    $region13: #{feed_forward.1} parent=1 // pred_fallthru
      _
    // Predicated region
    $region14: #{feed_forward.1} parent=1 // pred_check
      _
    $region15: #{feed_forward.1} parent=1 // pred_check_branch
      %19 = sbr.rel (0) target = $region17
    $region16: #{feed_forward.1} parent=1 // pred_region
      %21 = vsyncadd [#allocation3], 0
      %s22 = sshll.u32 %s3, 4
      %s23 = int_to_ptr.hbm [resolvable:$true] %s22
      %s24 = sshll.u32 [#allocation2], 4
      %s25 = int_to_ptr.vmem [resolvable:$true] %s24
      %30 = dma.hbm_to_vmem [thread:$0]  %s23, 8192, %s25, [#allocation3], 128, 128, 8
    $region17: #{feed_forward.1} parent=1 // pred_fallthru
      _
    // Predicated region
    $region18: #{feed_forward.1} parent=1 // pred_check
      _
    $region19: #{feed_forward.1} parent=1 // pred_check_branch
      %32 = sbr.rel (0) target = $region21
    $region20: #{feed_forward.1} parent=1 // pred_region
      _
    $region21: #{feed_forward.1} parent=1 // pred_fallthru
      _
    // Predicated region
    $region22: #{feed_forward.1} parent=1 // pred_check
      _
    $region23: #{feed_forward.1} parent=1 // pred_check_branch
      %34 = sbr.rel (0) target = $region25
    $region24: #{feed_forward.1} parent=1 // pred_region
      %36 = dma.done [#allocation3], 8192
    $region25: #{feed_forward.1} parent=1 // pred_fallthru
      _
    %v37 = vld [vmem:[%s0] sm:$0xff]
    %v38 = vld [vmem:[%s0 + $0x8] sm:$0xff]
    %v39 = vld [vmem:[%s0 + $0x10] sm:$0xff]
    %v40 = vld [vmem:[%s0 + $0x18] sm:$0xff]
    %v41 = vld [vmem:[%s0 + $0x20] sm:$0xff]
    %v42 = vld [vmem:[%s0 + $0x28] sm:$0xff]
    %v43 = vld [vmem:[%s0 + $0x30] sm:$0xff]
    %v44 = vld [vmem:[%s0 + $0x38] sm:$0xff]
    %v45 = vld [vmem:[%s0 + $0x40] sm:$0xff]
    %v46 = vld [vmem:[%s0 + $0x48] sm:$0xff]
    %v47 = vld [vmem:[%s0 + $0x50] sm:$0xff]
    %v48 = vld [vmem:[%s0 + $0x58] sm:$0xff]
    %v49 = vld [vmem:[%s0 + $0x60] sm:$0xff]
    %v50 = vld [vmem:[%s0 + $0x68] sm:$0xff]
    %v51 = vld [vmem:[%s0 + $0x70] sm:$0xff]
    %v52 = vld [vmem:[%s0 + $0x78] sm:$0xff]
    %v53 = vld [vmem:[%s0 + $0x80] sm:$0xff]
    %v54 = vld [vmem:[%s0 + $0x88] sm:$0xff]
    %v55 = vld [vmem:[%s0 + $0x90] sm:$0xff]
    %v56 = vld [vmem:[%s0 + $0x98] sm:$0xff]
    %v57 = vld [vmem:[%s0 + $0xa0] sm:$0xff]
    %v58 = vld [vmem:[%s0 + $0xa8] sm:$0xff]
    %v59 = vld [vmem:[%s0 + $0xb0] sm:$0xff]
    %v60 = vld [vmem:[%s0 + $0xb8] sm:$0xff]
    %v61 = vld [vmem:[%s0 + $0xc0] sm:$0xff]
    %v62 = vld [vmem:[%s0 + $0xc8] sm:$0xff]
    %v63 = vld [vmem:[%s0 + $0xd0] sm:$0xff]
    %v64 = vld [vmem:[%s0 + $0xd8] sm:$0xff]
    %v65 = vld [vmem:[%s0 + $0xe0] sm:$0xff]
    %v66 = vld [vmem:[%s0 + $0xe8] sm:$0xff]
    %v67 = vld [vmem:[%s0 + $0xf0] sm:$0xff]
    %v68 = vld [vmem:[%s0 + $0xf8] sm:$0xff]
    %v69 = vld [vmem:[%s1] sm:$0xff]
    %v70 = vld [vmem:[%s1 + $0x8] sm:$0xff]
    %v71 = vld [vmem:[%s1 + $0x10] sm:$0xff]
    %v72 = vld [vmem:[%s1 + $0x18] sm:$0xff]
    %v73 = vld [vmem:[%s1 + $0x20] sm:$0xff]
    %v74 = vld [vmem:[%s1 + $0x28] sm:$0xff]
    %v75 = vld [vmem:[%s1 + $0x30] sm:$0xff]
    %v76 = vld [vmem:[%s1 + $0x38] sm:$0xff]
    %v77 = vld [vmem:[%s1 + $0x40] sm:$0xff]
    %v78 = vld [vmem:[%s1 + $0x48] sm:$0xff]
    %v79 = vld [vmem:[%s1 + $0x50] sm:$0xff]
    %v80 = vld [vmem:[%s1 + $0x58] sm:$0xff]
    %v81 = vld [vmem:[%s1 + $0x60] sm:$0xff]
    %v82 = vld [vmem:[%s1 + $0x68] sm:$0xff]
    %v83 = vld [vmem:[%s1 + $0x70] sm:$0xff]
    %v84 = vld [vmem:[%s1 + $0x78] sm:$0xff]
    %v85 = vld [vmem:[%s1 + $0x80] sm:$0xff]
    %v86 = vld [vmem:[%s1 + $0x88] sm:$0xff]
    %v87 = vld [vmem:[%s1 + $0x90] sm:$0xff]
    %v88 = vld [vmem:[%s1 + $0x98] sm:$0xff]
    %v89 = vld [vmem:[%s1 + $0xa0] sm:$0xff]
    %v90 = vld [vmem:[%s1 + $0xa8] sm:$0xff]
    %v91 = vld [vmem:[%s1 + $0xb0] sm:$0xff]
    %v92 = vld [vmem:[%s1 + $0xb8] sm:$0xff]
    %v93 = vld [vmem:[%s1 + $0xc0] sm:$0xff]
    %v94 = vld [vmem:[%s1 + $0xc8] sm:$0xff]
    %v95 = vld [vmem:[%s1 + $0xd0] sm:$0xff]
    %v96 = vld [vmem:[%s1 + $0xd8] sm:$0xff]
    %v97 = vld [vmem:[%s1 + $0xe0] sm:$0xff]
    %v98 = vld [vmem:[%s1 + $0xe8] sm:$0xff]
    %v99 = vld [vmem:[%s1 + $0xf0] sm:$0xff]
    %v100 = vld [vmem:[%s1 + $0xf8] sm:$0xff]
    %v101 = vld [vmem:[%s1 + $0x100] sm:$0xff]
    %v102 = vld [vmem:[%s1 + $0x108] sm:$0xff]
    %v103 = vld [vmem:[%s1 + $0x110] sm:$0xff]
    %v104 = vld [vmem:[%s1 + $0x118] sm:$0xff]
    %v105 = vld [vmem:[%s1 + $0x120] sm:$0xff]
    %v106 = vld [vmem:[%s1 + $0x128] sm:$0xff]
    %v107 = vld [vmem:[%s1 + $0x130] sm:$0xff]
    %v108 = vld [vmem:[%s1 + $0x138] sm:$0xff]
    %v109 = vld [vmem:[%s1 + $0x140] sm:$0xff]
    %v110 = vld [vmem:[%s1 + $0x148] sm:$0xff]
    %v111 = vld [vmem:[%s1 + $0x150] sm:$0xff]
    %v112 = vld [vmem:[%s1 + $0x158] sm:$0xff]
    %v113 = vld [vmem:[%s1 + $0x160] sm:$0xff]
    %v114 = vld [vmem:[%s1 + $0x168] sm:$0xff]
    %v115 = vld [vmem:[%s1 + $0x170] sm:$0xff]
    %v116 = vld [vmem:[%s1 + $0x178] sm:$0xff]
    %v117 = vld [vmem:[%s1 + $0x180] sm:$0xff]
    %v118 = vld [vmem:[%s1 + $0x188] sm:$0xff]
    %v119 = vld [vmem:[%s1 + $0x190] sm:$0xff]
    %v120 = vld [vmem:[%s1 + $0x198] sm:$0xff]
    %v121 = vld [vmem:[%s1 + $0x1a0] sm:$0xff]
    %v122 = vld [vmem:[%s1 + $0x1a8] sm:$0xff]
    %v123 = vld [vmem:[%s1 + $0x1b0] sm:$0xff]
    %v124 = vld [vmem:[%s1 + $0x1b8] sm:$0xff]
    %v125 = vld [vmem:[%s1 + $0x1c0] sm:$0xff]
    %v126 = vld [vmem:[%s1 + $0x1c8] sm:$0xff]
    %v127 = vld [vmem:[%s1 + $0x1d0] sm:$0xff]
    %v128 = vld [vmem:[%s1 + $0x1d8] sm:$0xff]
    %v129 = vld [vmem:[%s1 + $0x1e0] sm:$0xff]
    %v130 = vld [vmem:[%s1 + $0x1e8] sm:$0xff]
    %v131 = vld [vmem:[%s1 + $0x1f0] sm:$0xff]
    %v132 = vld [vmem:[%s1 + $0x1f8] sm:$0xff]
    %v133 = vld [vmem:[%s2] sm:$0xf]
    %v135 = vperm.slane %v133, 0
    %v136 = vperm.slane %v133, 1
    %v137 = vperm.slane %v133, 2
    %v138 = vperm.slane %v133, 3
    %v175 = vunpack.c.l.b16 %v37
    %v176 = vunpack.c.h.b16 %v37
    %v177 = vunpack.c.l.b16 %v38
    %v178 = vunpack.c.h.b16 %v38
    %v179 = vunpack.c.l.b16 %v39
    %v180 = vunpack.c.h.b16 %v39
    %v181 = vunpack.c.l.b16 %v40
    %v182 = vunpack.c.h.b16 %v40
    %v183 = vunpack.c.l.b16 %v41
    %v184 = vunpack.c.h.b16 %v41
    %v185 = vunpack.c.l.b16 %v42
    %v186 = vunpack.c.h.b16 %v42
    %v187 = vunpack.c.l.b16 %v43
    %v188 = vunpack.c.h.b16 %v43
    %v189 = vunpack.c.l.b16 %v44
    %v190 = vunpack.c.h.b16 %v44
    %v191 = vunpack.c.l.b16 %v45
    %v192 = vunpack.c.h.b16 %v45
    %v193 = vunpack.c.l.b16 %v46
    %v194 = vunpack.c.h.b16 %v46
    %v195 = vunpack.c.l.b16 %v47
    %v196 = vunpack.c.h.b16 %v47
    %v197 = vunpack.c.l.b16 %v48
    %v198 = vunpack.c.h.b16 %v48
    %v199 = vunpack.c.l.b16 %v49
    %v200 = vunpack.c.h.b16 %v49
    %v201 = vunpack.c.l.b16 %v50
    %v202 = vunpack.c.h.b16 %v50
    %v203 = vunpack.c.l.b16 %v51
    %v204 = vunpack.c.h.b16 %v51
    %v205 = vunpack.c.l.b16 %v52
    %v206 = vunpack.c.h.b16 %v52
    %v207 = vunpack.c.l.b16 %v53
    %v208 = vunpack.c.h.b16 %v53
    %v209 = vunpack.c.l.b16 %v54
    %v210 = vunpack.c.h.b16 %v54
    %v211 = vunpack.c.l.b16 %v55
    %v212 = vunpack.c.h.b16 %v55
    %v213 = vunpack.c.l.b16 %v56
    %v214 = vunpack.c.h.b16 %v56
    %v215 = vunpack.c.l.b16 %v57
    %v216 = vunpack.c.h.b16 %v57
    %v217 = vunpack.c.l.b16 %v58
    %v218 = vunpack.c.h.b16 %v58
    %v219 = vunpack.c.l.b16 %v59
    %v220 = vunpack.c.h.b16 %v59
    %v221 = vunpack.c.l.b16 %v60
    %v222 = vunpack.c.h.b16 %v60
    %v223 = vunpack.c.l.b16 %v61
    %v224 = vunpack.c.h.b16 %v61
    %v225 = vunpack.c.l.b16 %v62
    %v226 = vunpack.c.h.b16 %v62
    %v227 = vunpack.c.l.b16 %v63
    %v228 = vunpack.c.h.b16 %v63
    %v229 = vunpack.c.l.b16 %v64
    %v230 = vunpack.c.h.b16 %v64
    %v231 = vunpack.c.l.b16 %v65
    %v232 = vunpack.c.h.b16 %v65
    %v233 = vunpack.c.l.b16 %v66
    %v234 = vunpack.c.h.b16 %v66
    %v235 = vunpack.c.l.b16 %v67
    %v236 = vunpack.c.h.b16 %v67
    %v237 = vunpack.c.l.b16 %v68
    %v238 = vunpack.c.h.b16 %v68
    %v239 = vpack.c.b16 %v177, %v175
    %v240 = vpack.c.b16 %v178, %v176
    %v241 = vpack.c.b16 %v181, %v179
    %v242 = vpack.c.b16 %v182, %v180
    %v243 = vpack.c.b16 %v185, %v183
    %v244 = vpack.c.b16 %v186, %v184
    %v245 = vpack.c.b16 %v189, %v187
    %v246 = vpack.c.b16 %v190, %v188
    %v247 = vpack.c.b16 %v193, %v191
    %v248 = vpack.c.b16 %v194, %v192
    %v249 = vpack.c.b16 %v197, %v195
    %v250 = vpack.c.b16 %v198, %v196
    %v251 = vpack.c.b16 %v201, %v199
    %v252 = vpack.c.b16 %v202, %v200
    %v253 = vpack.c.b16 %v205, %v203
    %v254 = vpack.c.b16 %v206, %v204
    %v255 = vpack.c.b16 %v209, %v207
    %v256 = vpack.c.b16 %v210, %v208
    %v257 = vpack.c.b16 %v213, %v211
    %v258 = vpack.c.b16 %v214, %v212
    %v259 = vpack.c.b16 %v217, %v215
    %v260 = vpack.c.b16 %v218, %v216
    %v261 = vpack.c.b16 %v221, %v219
    %v262 = vpack.c.b16 %v222, %v220
    %v263 = vpack.c.b16 %v225, %v223
    %v264 = vpack.c.b16 %v226, %v224
    %v265 = vpack.c.b16 %v229, %v227
    %v266 = vpack.c.b16 %v230, %v228
    %v267 = vpack.c.b16 %v233, %v231
    %v268 = vpack.c.b16 %v234, %v232
    %v269 = vpack.c.b16 %v237, %v235
    %v270 = vpack.c.b16 %v238, %v236
    %v367 = vunpack.c.l.b16 %v69
    %v368 = vunpack.c.h.b16 %v69
    %v369 = vunpack.c.l.b16 %v70
    %v370 = vunpack.c.h.b16 %v70
    %v371 = vunpack.c.l.b16 %v71
    %v372 = vunpack.c.h.b16 %v71
    %v373 = vunpack.c.l.b16 %v72
    %v374 = vunpack.c.h.b16 %v72
    %v375 = vunpack.c.l.b16 %v73
    %v376 = vunpack.c.h.b16 %v73
    %v377 = vunpack.c.l.b16 %v74
    %v378 = vunpack.c.h.b16 %v74
    %v379 = vunpack.c.l.b16 %v75
    %v380 = vunpack.c.h.b16 %v75
    %v381 = vunpack.c.l.b16 %v76
    %v382 = vunpack.c.h.b16 %v76
    %v383 = vunpack.c.l.b16 %v77
    %v384 = vunpack.c.h.b16 %v77
    %v385 = vunpack.c.l.b16 %v78
    %v386 = vunpack.c.h.b16 %v78
    %v387 = vunpack.c.l.b16 %v79
    %v388 = vunpack.c.h.b16 %v79
    %v389 = vunpack.c.l.b16 %v80
    %v390 = vunpack.c.h.b16 %v80
    %v391 = vunpack.c.l.b16 %v81
    %v392 = vunpack.c.h.b16 %v81
    %v393 = vunpack.c.l.b16 %v82
    %v394 = vunpack.c.h.b16 %v82
    %v395 = vunpack.c.l.b16 %v83
    %v396 = vunpack.c.h.b16 %v83
    %v397 = vunpack.c.l.b16 %v84
    %v398 = vunpack.c.h.b16 %v84
    %v399 = vunpack.c.l.b16 %v85
    %v400 = vunpack.c.h.b16 %v85
    %v401 = vunpack.c.l.b16 %v86
    %v402 = vunpack.c.h.b16 %v86
    %v403 = vunpack.c.l.b16 %v87
    %v404 = vunpack.c.h.b16 %v87
    %v405 = vunpack.c.l.b16 %v88
    %v406 = vunpack.c.h.b16 %v88
    %v407 = vunpack.c.l.b16 %v89
    %v408 = vunpack.c.h.b16 %v89
    %v409 = vunpack.c.l.b16 %v90
    %v410 = vunpack.c.h.b16 %v90
    %v411 = vunpack.c.l.b16 %v91
    %v412 = vunpack.c.h.b16 %v91
    %v413 = vunpack.c.l.b16 %v92
    %v414 = vunpack.c.h.b16 %v92
    %v415 = vunpack.c.l.b16 %v93
    %v416 = vunpack.c.h.b16 %v93
    %v417 = vunpack.c.l.b16 %v94
    %v418 = vunpack.c.h.b16 %v94
    %v419 = vunpack.c.l.b16 %v95
    %v420 = vunpack.c.h.b16 %v95
    %v421 = vunpack.c.l.b16 %v96
    %v422 = vunpack.c.h.b16 %v96
    %v423 = vunpack.c.l.b16 %v97
    %v424 = vunpack.c.h.b16 %v97
    %v425 = vunpack.c.l.b16 %v98
    %v426 = vunpack.c.h.b16 %v98
    %v427 = vunpack.c.l.b16 %v99
    %v428 = vunpack.c.h.b16 %v99
    %v429 = vunpack.c.l.b16 %v100
    %v430 = vunpack.c.h.b16 %v100
    %v431 = vunpack.c.l.b16 %v101
    %v432 = vunpack.c.h.b16 %v101
    %v433 = vunpack.c.l.b16 %v102
    %v434 = vunpack.c.h.b16 %v102
    %v435 = vunpack.c.l.b16 %v103
    %v436 = vunpack.c.h.b16 %v103
    %v437 = vunpack.c.l.b16 %v104
    %v438 = vunpack.c.h.b16 %v104
    %v439 = vunpack.c.l.b16 %v105
    %v440 = vunpack.c.h.b16 %v105
    %v441 = vunpack.c.l.b16 %v106
    %v442 = vunpack.c.h.b16 %v106
    %v443 = vunpack.c.l.b16 %v107
    %v444 = vunpack.c.h.b16 %v107
    %v445 = vunpack.c.l.b16 %v108
    %v446 = vunpack.c.h.b16 %v108
    %v447 = vunpack.c.l.b16 %v109
    %v448 = vunpack.c.h.b16 %v109
    %v449 = vunpack.c.l.b16 %v110
    %v450 = vunpack.c.h.b16 %v110
    %v451 = vunpack.c.l.b16 %v111
    %v452 = vunpack.c.h.b16 %v111
    %v453 = vunpack.c.l.b16 %v112
    %v454 = vunpack.c.h.b16 %v112
    %v455 = vunpack.c.l.b16 %v113
    %v456 = vunpack.c.h.b16 %v113
    %v457 = vunpack.c.l.b16 %v114
    %v458 = vunpack.c.h.b16 %v114
    %v459 = vunpack.c.l.b16 %v115
    %v460 = vunpack.c.h.b16 %v115
    %v461 = vunpack.c.l.b16 %v116
    %v462 = vunpack.c.h.b16 %v116
    %v463 = vunpack.c.l.b16 %v117
    %v464 = vunpack.c.h.b16 %v117
    %v465 = vunpack.c.l.b16 %v118
    %v466 = vunpack.c.h.b16 %v118
    %v467 = vunpack.c.l.b16 %v119
    %v468 = vunpack.c.h.b16 %v119
    %v469 = vunpack.c.l.b16 %v120
    %v470 = vunpack.c.h.b16 %v120
    %v471 = vunpack.c.l.b16 %v121
    %v472 = vunpack.c.h.b16 %v121
    %v473 = vunpack.c.l.b16 %v122
    %v474 = vunpack.c.h.b16 %v122
    %v475 = vunpack.c.l.b16 %v123
    %v476 = vunpack.c.h.b16 %v123
    %v477 = vunpack.c.l.b16 %v124
    %v478 = vunpack.c.h.b16 %v124
    %v479 = vunpack.c.l.b16 %v125
    %v480 = vunpack.c.h.b16 %v125
    %v481 = vunpack.c.l.b16 %v126
    %v482 = vunpack.c.h.b16 %v126
    %v483 = vunpack.c.l.b16 %v127
    %v484 = vunpack.c.h.b16 %v127
    %v485 = vunpack.c.l.b16 %v128
    %v486 = vunpack.c.h.b16 %v128
    %v487 = vunpack.c.l.b16 %v129
    %v488 = vunpack.c.h.b16 %v129
    %v489 = vunpack.c.l.b16 %v130
    %v490 = vunpack.c.h.b16 %v130
    %v491 = vunpack.c.l.b16 %v131
    %v492 = vunpack.c.h.b16 %v131
    %v493 = vunpack.c.l.b16 %v132
    %v494 = vunpack.c.h.b16 %v132
    %v495 = vpack.c.b16 %v371, %v367
    %v496 = vpack.c.b16 %v372, %v368
    %v497 = vpack.c.b16 %v373, %v369
    %v498 = vpack.c.b16 %v374, %v370
    %v499 = vpack.c.b16 %v379, %v375
    %v500 = vpack.c.b16 %v380, %v376
    %v501 = vpack.c.b16 %v381, %v377
    %v502 = vpack.c.b16 %v382, %v378
    %v503 = vpack.c.b16 %v387, %v383
    %v504 = vpack.c.b16 %v388, %v384
    %v505 = vpack.c.b16 %v389, %v385
    %v506 = vpack.c.b16 %v390, %v386
    %v507 = vpack.c.b16 %v395, %v391
    %v508 = vpack.c.b16 %v396, %v392
    %v509 = vpack.c.b16 %v397, %v393
    %v510 = vpack.c.b16 %v398, %v394
    %v511 = vpack.c.b16 %v403, %v399
    %v512 = vpack.c.b16 %v404, %v400
    %v513 = vpack.c.b16 %v405, %v401
    %v514 = vpack.c.b16 %v406, %v402
    %v515 = vpack.c.b16 %v411, %v407
    %v516 = vpack.c.b16 %v412, %v408
    %v517 = vpack.c.b16 %v413, %v409
    %v518 = vpack.c.b16 %v414, %v410
    %v519 = vpack.c.b16 %v419, %v415
    %v520 = vpack.c.b16 %v420, %v416
    %v521 = vpack.c.b16 %v421, %v417
    %v522 = vpack.c.b16 %v422, %v418
    %v523 = vpack.c.b16 %v427, %v423
    %v524 = vpack.c.b16 %v428, %v424
    %v525 = vpack.c.b16 %v429, %v425
    %v526 = vpack.c.b16 %v430, %v426
    %v527 = vpack.c.b16 %v435, %v431
    %v528 = vpack.c.b16 %v436, %v432
    %v529 = vpack.c.b16 %v437, %v433
    %v530 = vpack.c.b16 %v438, %v434
    %v531 = vpack.c.b16 %v443, %v439
    %v532 = vpack.c.b16 %v444, %v440
    %v533 = vpack.c.b16 %v445, %v441
    %v534 = vpack.c.b16 %v446, %v442
    %v535 = vpack.c.b16 %v451, %v447
    %v536 = vpack.c.b16 %v452, %v448
    %v537 = vpack.c.b16 %v453, %v449
    %v538 = vpack.c.b16 %v454, %v450
    %v539 = vpack.c.b16 %v459, %v455
    %v540 = vpack.c.b16 %v460, %v456
    %v541 = vpack.c.b16 %v461, %v457
    %v542 = vpack.c.b16 %v462, %v458
    %v543 = vpack.c.b16 %v467, %v463
    %v544 = vpack.c.b16 %v468, %v464
    %v545 = vpack.c.b16 %v469, %v465
    %v546 = vpack.c.b16 %v470, %v466
    %v547 = vpack.c.b16 %v475, %v471
    %v548 = vpack.c.b16 %v476, %v472
    %v549 = vpack.c.b16 %v477, %v473
    %v550 = vpack.c.b16 %v478, %v474
    %v551 = vpack.c.b16 %v483, %v479
    %v552 = vpack.c.b16 %v484, %v480
    %v553 = vpack.c.b16 %v485, %v481
    %v554 = vpack.c.b16 %v486, %v482
    %v555 = vpack.c.b16 %v491, %v487
    %v556 = vpack.c.b16 %v492, %v488
    %v557 = vpack.c.b16 %v493, %v489
    %v558 = vpack.c.b16 %v494, %v490
    %623 = vmatpush.bf16.msra.mxu0 %v523
    %624 = vmatpush.bf16.msra.mxu0 %v519
    %625 = vmatpush.bf16.msra.mxu0 %v515
    %626 = vmatpush.bf16.msra.mxu0 %v511
    %627 = vmatpush.bf16.msra.mxu0 %v507
    %628 = vmatpush.bf16.msra.mxu0 %v503
    %629 = vmatpush.bf16.msra.mxu0 %v499
    %630 = vmatpush.bf16.msra.mxu0 %v495
    %631 = vmatmul.bf16.gmra.mxu0 %v239
    %v632 = vpop.f32.mrf.mxu0
    %v633 = vadd.f32 %v135, %v632
    %v634 = vpop.f32.mrf.mxu0
    %v635 = vadd.f32 %v135, %v634
    %636 = vmatmul.bf16.gmra.mxu0 %v241
    %v637 = vpop.f32.mrf.mxu0
    %v638 = vadd.f32 %v135, %v637
    %v639 = vpop.f32.mrf.mxu0
    %v640 = vadd.f32 %v135, %v639
    %641 = vmatmul.bf16.gmra.mxu0 %v243
    %v642 = vpop.f32.mrf.mxu0
    %v643 = vadd.f32 %v135, %v642
    %v644 = vpop.f32.mrf.mxu0
    %v645 = vadd.f32 %v135, %v644
    %646 = vmatmul.bf16.gmra.mxu0 %v245
    %v647 = vpop.f32.mrf.mxu0
    %v648 = vadd.f32 %v135, %v647
    %v649 = vpop.f32.mrf.mxu0
    %v650 = vadd.f32 %v135, %v649
    %651 = vmatmul.bf16.gmra.mxu0 %v247
    %v652 = vpop.f32.mrf.mxu0
    %v653 = vadd.f32 %v135, %v652
    %v654 = vpop.f32.mrf.mxu0
    %v655 = vadd.f32 %v135, %v654
    %656 = vmatmul.bf16.gmra.mxu0 %v249
    %v657 = vpop.f32.mrf.mxu0
    %v658 = vadd.f32 %v135, %v657
    %v659 = vpop.f32.mrf.mxu0
    %v660 = vadd.f32 %v135, %v659
    %661 = vmatmul.bf16.gmra.mxu0 %v251
    %v662 = vpop.f32.mrf.mxu0
    %v663 = vadd.f32 %v135, %v662
    %v664 = vpop.f32.mrf.mxu0
    %v665 = vadd.f32 %v135, %v664
    %666 = vmatmul.bf16.gmra.mxu0 %v253
    %v667 = vpop.f32.mrf.mxu0
    %v668 = vadd.f32 %v135, %v667
    %v669 = vpop.f32.mrf.mxu0
    %v670 = vadd.f32 %v135, %v669
    %671 = vmatmul.bf16.gmra.mxu0 %v255
    %v672 = vpop.f32.mrf.mxu0
    %v673 = vadd.f32 %v135, %v672
    %v674 = vpop.f32.mrf.mxu0
    %v675 = vadd.f32 %v135, %v674
    %676 = vmatmul.bf16.gmra.mxu0 %v257
    %v677 = vpop.f32.mrf.mxu0
    %v678 = vadd.f32 %v135, %v677
    %v679 = vpop.f32.mrf.mxu0
    %v680 = vadd.f32 %v135, %v679
    %681 = vmatmul.bf16.gmra.mxu0 %v259
    %v682 = vpop.f32.mrf.mxu0
    %v683 = vadd.f32 %v135, %v682
    %v684 = vpop.f32.mrf.mxu0
    %v685 = vadd.f32 %v135, %v684
    %686 = vmatmul.bf16.gmra.mxu0 %v261
    %v687 = vpop.f32.mrf.mxu0
    %v688 = vadd.f32 %v135, %v687
    %v689 = vpop.f32.mrf.mxu0
    %v690 = vadd.f32 %v135, %v689
    %691 = vmatmul.bf16.gmra.mxu0 %v263
    %v692 = vpop.f32.mrf.mxu0
    %v693 = vadd.f32 %v135, %v692
    %v694 = vpop.f32.mrf.mxu0
    %v695 = vadd.f32 %v135, %v694
    %696 = vmatmul.bf16.gmra.mxu0 %v265
    %v697 = vpop.f32.mrf.mxu0
    %v698 = vadd.f32 %v135, %v697
    %v699 = vpop.f32.mrf.mxu0
    %v700 = vadd.f32 %v135, %v699
    %701 = vmatmul.bf16.gmra.mxu0 %v267
    %v702 = vpop.f32.mrf.mxu0
    %v703 = vadd.f32 %v135, %v702
    %v704 = vpop.f32.mrf.mxu0
    %v705 = vadd.f32 %v135, %v704
    %706 = vmatmul.bf16.gmra.mxu0 %v269
    %v707 = vpop.f32.mrf.mxu0
    %v708 = vadd.f32 %v135, %v707
    %v709 = vpop.f32.mrf.mxu0
    %v710 = vadd.f32 %v135, %v709
    %711 = vdwg.mxu0
    %712 = vmatpush.bf16.msra.mxu0 %v555
    %713 = vmatpush.bf16.msra.mxu0 %v551
    %714 = vmatpush.bf16.msra.mxu0 %v547
    %715 = vmatpush.bf16.msra.mxu0 %v543
    %716 = vmatpush.bf16.msra.mxu0 %v539
    %717 = vmatpush.bf16.msra.mxu0 %v535
    %718 = vmatpush.bf16.msra.mxu0 %v531
    %719 = vmatpush.bf16.msra.mxu0 %v527
    %720 = vmatmul.bf16.gmra.mxu0 %v240
    %v721 = vpop.f32.mrf.mxu0
    %v722 = vadd.f32 %v633, %v721
    %v723 = vpop.f32.mrf.mxu0
    %v724 = vadd.f32 %v635, %v723
    %725 = vmatmul.bf16.gmra.mxu0 %v242
    %v726 = vpop.f32.mrf.mxu0
    %v727 = vadd.f32 %v638, %v726
    %v728 = vpop.f32.mrf.mxu0
    %v729 = vadd.f32 %v640, %v728
    %730 = vmatmul.bf16.gmra.mxu0 %v244
    %v731 = vpop.f32.mrf.mxu0
    %v732 = vadd.f32 %v643, %v731
    %v733 = vpop.f32.mrf.mxu0
    %v734 = vadd.f32 %v645, %v733
    %735 = vmatmul.bf16.gmra.mxu0 %v246
    %v736 = vpop.f32.mrf.mxu0
    %v737 = vadd.f32 %v648, %v736
    %v738 = vpop.f32.mrf.mxu0
    %v739 = vadd.f32 %v650, %v738
    %740 = vmatmul.bf16.gmra.mxu0 %v248
    %v741 = vpop.f32.mrf.mxu0
    %v742 = vadd.f32 %v653, %v741
    %v743 = vpop.f32.mrf.mxu0
    %v744 = vadd.f32 %v655, %v743
    %745 = vmatmul.bf16.gmra.mxu0 %v250
    %v746 = vpop.f32.mrf.mxu0
    %v747 = vadd.f32 %v658, %v746
    %v748 = vpop.f32.mrf.mxu0
    %v749 = vadd.f32 %v660, %v748
    %750 = vmatmul.bf16.gmra.mxu0 %v252
    %v751 = vpop.f32.mrf.mxu0
    %v752 = vadd.f32 %v663, %v751
    %v753 = vpop.f32.mrf.mxu0
    %v754 = vadd.f32 %v665, %v753
    %755 = vmatmul.bf16.gmra.mxu0 %v254
    %v756 = vpop.f32.mrf.mxu0
    %v757 = vadd.f32 %v668, %v756
    %v758 = vpop.f32.mrf.mxu0
    %v759 = vadd.f32 %v670, %v758
    %760 = vmatmul.bf16.gmra.mxu0 %v256
    %v761 = vpop.f32.mrf.mxu0
    %v762 = vadd.f32 %v673, %v761
    %v763 = vpop.f32.mrf.mxu0
    %v764 = vadd.f32 %v675, %v763
    %765 = vmatmul.bf16.gmra.mxu0 %v258
    %v766 = vpop.f32.mrf.mxu0
    %v767 = vadd.f32 %v678, %v766
    %v768 = vpop.f32.mrf.mxu0
    %v769 = vadd.f32 %v680, %v768
    %770 = vmatmul.bf16.gmra.mxu0 %v260
    %v771 = vpop.f32.mrf.mxu0
    %v772 = vadd.f32 %v683, %v771
    %v773 = vpop.f32.mrf.mxu0
    %v774 = vadd.f32 %v685, %v773
    %775 = vmatmul.bf16.gmra.mxu0 %v262
    %v776 = vpop.f32.mrf.mxu0
    %v777 = vadd.f32 %v688, %v776
    %v778 = vpop.f32.mrf.mxu0
    %v779 = vadd.f32 %v690, %v778
    %780 = vmatmul.bf16.gmra.mxu0 %v264
    %v781 = vpop.f32.mrf.mxu0
    %v782 = vadd.f32 %v693, %v781
    %v783 = vpop.f32.mrf.mxu0
    %v784 = vadd.f32 %v695, %v783
    %785 = vmatmul.bf16.gmra.mxu0 %v266
    %v786 = vpop.f32.mrf.mxu0
    %v787 = vadd.f32 %v698, %v786
    %v788 = vpop.f32.mrf.mxu0
    %v789 = vadd.f32 %v700, %v788
    %790 = vmatmul.bf16.gmra.mxu0 %v268
    %v791 = vpop.f32.mrf.mxu0
    %v792 = vadd.f32 %v703, %v791
    %v793 = vpop.f32.mrf.mxu0
    %v794 = vadd.f32 %v705, %v793
    %795 = vmatmul.bf16.gmra.mxu0 %v270
    %v796 = vpop.f32.mrf.mxu0
    %v797 = vadd.f32 %v708, %v796
    %v798 = vpop.f32.mrf.mxu0
    %v799 = vadd.f32 %v710, %v798
    %800 = vdwg.mxu0
    %801 = vmatpush.bf16.msra.mxu0 %v524
    %802 = vmatpush.bf16.msra.mxu0 %v520
    %803 = vmatpush.bf16.msra.mxu0 %v516
    %804 = vmatpush.bf16.msra.mxu0 %v512
    %805 = vmatpush.bf16.msra.mxu0 %v508
    %806 = vmatpush.bf16.msra.mxu0 %v504
    %807 = vmatpush.bf16.msra.mxu0 %v500
    %808 = vmatpush.bf16.msra.mxu0 %v496
    %809 = vmatmul.bf16.gmra.mxu0 %v239
    %v810 = vpop.f32.mrf.mxu0
    %v811 = vadd.f32 %v136, %v810
    %v812 = vpop.f32.mrf.mxu0
    %v813 = vadd.f32 %v136, %v812
    %814 = vmatmul.bf16.gmra.mxu0 %v241
    %v815 = vpop.f32.mrf.mxu0
    %v816 = vadd.f32 %v136, %v815
    %v817 = vpop.f32.mrf.mxu0
    %v818 = vadd.f32 %v136, %v817
    %819 = vmatmul.bf16.gmra.mxu0 %v243
    %v820 = vpop.f32.mrf.mxu0
    %v821 = vadd.f32 %v136, %v820
    %v822 = vpop.f32.mrf.mxu0
    %v823 = vadd.f32 %v136, %v822
    %824 = vmatmul.bf16.gmra.mxu0 %v245
    %v825 = vpop.f32.mrf.mxu0
    %v826 = vadd.f32 %v136, %v825
    %v827 = vpop.f32.mrf.mxu0
    %v828 = vadd.f32 %v136, %v827
    %829 = vmatmul.bf16.gmra.mxu0 %v247
    %v830 = vpop.f32.mrf.mxu0
    %v831 = vadd.f32 %v136, %v830
    %v832 = vpop.f32.mrf.mxu0
    %v833 = vadd.f32 %v136, %v832
    %834 = vmatmul.bf16.gmra.mxu0 %v249
    %v835 = vpop.f32.mrf.mxu0
    %v836 = vadd.f32 %v136, %v835
    %v837 = vpop.f32.mrf.mxu0
    %v838 = vadd.f32 %v136, %v837
    %839 = vmatmul.bf16.gmra.mxu0 %v251
    %v840 = vpop.f32.mrf.mxu0
    %v841 = vadd.f32 %v136, %v840
    %v842 = vpop.f32.mrf.mxu0
    %v843 = vadd.f32 %v136, %v842
    %844 = vmatmul.bf16.gmra.mxu0 %v253
    %v845 = vpop.f32.mrf.mxu0
    %v846 = vadd.f32 %v136, %v845
    %v847 = vpop.f32.mrf.mxu0
    %v848 = vadd.f32 %v136, %v847
    %849 = vmatmul.bf16.gmra.mxu0 %v255
    %v850 = vpop.f32.mrf.mxu0
    %v851 = vadd.f32 %v136, %v850
    %v852 = vpop.f32.mrf.mxu0
    %v853 = vadd.f32 %v136, %v852
    %854 = vmatmul.bf16.gmra.mxu0 %v257
    %v855 = vpop.f32.mrf.mxu0
    %v856 = vadd.f32 %v136, %v855
    %v857 = vpop.f32.mrf.mxu0
    %v858 = vadd.f32 %v136, %v857
    %859 = vmatmul.bf16.gmra.mxu0 %v259
    %v860 = vpop.f32.mrf.mxu0
    %v861 = vadd.f32 %v136, %v860
    %v862 = vpop.f32.mrf.mxu0
    %v863 = vadd.f32 %v136, %v862
    %864 = vmatmul.bf16.gmra.mxu0 %v261
    %v865 = vpop.f32.mrf.mxu0
    %v866 = vadd.f32 %v136, %v865
    %v867 = vpop.f32.mrf.mxu0
    %v868 = vadd.f32 %v136, %v867
    %869 = vmatmul.bf16.gmra.mxu0 %v263
    %v870 = vpop.f32.mrf.mxu0
    %v871 = vadd.f32 %v136, %v870
    %v872 = vpop.f32.mrf.mxu0
    %v873 = vadd.f32 %v136, %v872
    %874 = vmatmul.bf16.gmra.mxu0 %v265
    %v875 = vpop.f32.mrf.mxu0
    %v876 = vadd.f32 %v136, %v875
    %v877 = vpop.f32.mrf.mxu0
    %v878 = vadd.f32 %v136, %v877
    %879 = vmatmul.bf16.gmra.mxu0 %v267
    %v880 = vpop.f32.mrf.mxu0
    %v881 = vadd.f32 %v136, %v880
    %v882 = vpop.f32.mrf.mxu0
    %v883 = vadd.f32 %v136, %v882
    %884 = vmatmul.bf16.gmra.mxu0 %v269
    %v885 = vpop.f32.mrf.mxu0
    %v886 = vadd.f32 %v136, %v885
    %v887 = vpop.f32.mrf.mxu0
    %v888 = vadd.f32 %v136, %v887
    %889 = vdwg.mxu0
    %890 = vmatpush.bf16.msra.mxu0 %v556
    %891 = vmatpush.bf16.msra.mxu0 %v552
    %892 = vmatpush.bf16.msra.mxu0 %v548
    %893 = vmatpush.bf16.msra.mxu0 %v544
    %894 = vmatpush.bf16.msra.mxu0 %v540
    %895 = vmatpush.bf16.msra.mxu0 %v536
    %896 = vmatpush.bf16.msra.mxu0 %v532
    %897 = vmatpush.bf16.msra.mxu0 %v528
    %898 = vmatmul.bf16.gmra.mxu0 %v240
    %v899 = vpop.f32.mrf.mxu0
    %v900 = vadd.f32 %v811, %v899
    %v901 = vpop.f32.mrf.mxu0
    %v902 = vadd.f32 %v813, %v901
    %903 = vmatmul.bf16.gmra.mxu0 %v242
    %v904 = vpop.f32.mrf.mxu0
    %v905 = vadd.f32 %v816, %v904
    %v906 = vpop.f32.mrf.mxu0
    %v907 = vadd.f32 %v818, %v906
    %908 = vmatmul.bf16.gmra.mxu0 %v244
    %v909 = vpop.f32.mrf.mxu0
    %v910 = vadd.f32 %v821, %v909
    %v911 = vpop.f32.mrf.mxu0
    %v912 = vadd.f32 %v823, %v911
    %913 = vmatmul.bf16.gmra.mxu0 %v246
    %v914 = vpop.f32.mrf.mxu0
    %v915 = vadd.f32 %v826, %v914
    %v916 = vpop.f32.mrf.mxu0
    %v917 = vadd.f32 %v828, %v916
    %918 = vmatmul.bf16.gmra.mxu0 %v248
    %v919 = vpop.f32.mrf.mxu0
    %v920 = vadd.f32 %v831, %v919
    %v921 = vpop.f32.mrf.mxu0
    %v922 = vadd.f32 %v833, %v921
    %923 = vmatmul.bf16.gmra.mxu0 %v250
    %v924 = vpop.f32.mrf.mxu0
    %v925 = vadd.f32 %v836, %v924
    %v926 = vpop.f32.mrf.mxu0
    %v927 = vadd.f32 %v838, %v926
    %928 = vmatmul.bf16.gmra.mxu0 %v252
    %v929 = vpop.f32.mrf.mxu0
    %v930 = vadd.f32 %v841, %v929
    %v931 = vpop.f32.mrf.mxu0
    %v932 = vadd.f32 %v843, %v931
    %933 = vmatmul.bf16.gmra.mxu0 %v254
    %v934 = vpop.f32.mrf.mxu0
    %v935 = vadd.f32 %v846, %v934
    %v936 = vpop.f32.mrf.mxu0
    %v937 = vadd.f32 %v848, %v936
    %938 = vmatmul.bf16.gmra.mxu0 %v256
    %v939 = vpop.f32.mrf.mxu0
    %v940 = vadd.f32 %v851, %v939
    %v941 = vpop.f32.mrf.mxu0
    %v942 = vadd.f32 %v853, %v941
    %943 = vmatmul.bf16.gmra.mxu0 %v258
    %v944 = vpop.f32.mrf.mxu0
    %v945 = vadd.f32 %v856, %v944
    %v946 = vpop.f32.mrf.mxu0
    %v947 = vadd.f32 %v858, %v946
    %948 = vmatmul.bf16.gmra.mxu0 %v260
    %v949 = vpop.f32.mrf.mxu0
    %v950 = vadd.f32 %v861, %v949
    %v951 = vpop.f32.mrf.mxu0
    %v952 = vadd.f32 %v863, %v951
    %953 = vmatmul.bf16.gmra.mxu0 %v262
    %v954 = vpop.f32.mrf.mxu0
    %v955 = vadd.f32 %v866, %v954
    %v956 = vpop.f32.mrf.mxu0
    %v957 = vadd.f32 %v868, %v956
    %958 = vmatmul.bf16.gmra.mxu0 %v264
    %v959 = vpop.f32.mrf.mxu0
    %v960 = vadd.f32 %v871, %v959
    %v961 = vpop.f32.mrf.mxu0
    %v962 = vadd.f32 %v873, %v961
    %963 = vmatmul.bf16.gmra.mxu0 %v266
    %v964 = vpop.f32.mrf.mxu0
    %v965 = vadd.f32 %v876, %v964
    %v966 = vpop.f32.mrf.mxu0
    %v967 = vadd.f32 %v878, %v966
    %968 = vmatmul.bf16.gmra.mxu0 %v268
    %v969 = vpop.f32.mrf.mxu0
    %v970 = vadd.f32 %v881, %v969
    %v971 = vpop.f32.mrf.mxu0
    %v972 = vadd.f32 %v883, %v971
    %973 = vmatmul.bf16.gmra.mxu0 %v270
    %v974 = vpop.f32.mrf.mxu0
    %v975 = vadd.f32 %v886, %v974
    %v976 = vpop.f32.mrf.mxu0
    %v977 = vadd.f32 %v888, %v976
    %978 = vdwg.mxu0
    %979 = vmatpush.bf16.msra.mxu0 %v525
    %980 = vmatpush.bf16.msra.mxu0 %v521
    %981 = vmatpush.bf16.msra.mxu0 %v517
    %982 = vmatpush.bf16.msra.mxu0 %v513
    %983 = vmatpush.bf16.msra.mxu0 %v509
    %984 = vmatpush.bf16.msra.mxu0 %v505
    %985 = vmatpush.bf16.msra.mxu0 %v501
    %986 = vmatpush.bf16.msra.mxu0 %v497
    %987 = vmatmul.bf16.gmra.mxu0 %v239
    %v988 = vpop.f32.mrf.mxu0
    %v989 = vadd.f32 %v137, %v988
    %v990 = vpop.f32.mrf.mxu0
    %v991 = vadd.f32 %v137, %v990
    %992 = vmatmul.bf16.gmra.mxu0 %v241
    %v993 = vpop.f32.mrf.mxu0
    %v994 = vadd.f32 %v137, %v993
    %v995 = vpop.f32.mrf.mxu0
    %v996 = vadd.f32 %v137, %v995
    %997 = vmatmul.bf16.gmra.mxu0 %v243
    %v998 = vpop.f32.mrf.mxu0
    %v999 = vadd.f32 %v137, %v998
    %v1000 = vpop.f32.mrf.mxu0
    %v1001 = vadd.f32 %v137, %v1000
    %1002 = vmatmul.bf16.gmra.mxu0 %v245
    %v1003 = vpop.f32.mrf.mxu0
    %v1004 = vadd.f32 %v137, %v1003
    %v1005 = vpop.f32.mrf.mxu0
    %v1006 = vadd.f32 %v137, %v1005
    %1007 = vmatmul.bf16.gmra.mxu0 %v247
    %v1008 = vpop.f32.mrf.mxu0
    %v1009 = vadd.f32 %v137, %v1008
    %v1010 = vpop.f32.mrf.mxu0
    %v1011 = vadd.f32 %v137, %v1010
    %1012 = vmatmul.bf16.gmra.mxu0 %v249
    %v1013 = vpop.f32.mrf.mxu0
    %v1014 = vadd.f32 %v137, %v1013
    %v1015 = vpop.f32.mrf.mxu0
    %v1016 = vadd.f32 %v137, %v1015
    %1017 = vmatmul.bf16.gmra.mxu0 %v251
    %v1018 = vpop.f32.mrf.mxu0
    %v1019 = vadd.f32 %v137, %v1018
    %v1020 = vpop.f32.mrf.mxu0
    %v1021 = vadd.f32 %v137, %v1020
    %1022 = vmatmul.bf16.gmra.mxu0 %v253
    %v1023 = vpop.f32.mrf.mxu0
    %v1024 = vadd.f32 %v137, %v1023
    %v1025 = vpop.f32.mrf.mxu0
    %v1026 = vadd.f32 %v137, %v1025
    %1027 = vmatmul.bf16.gmra.mxu0 %v255
    %v1028 = vpop.f32.mrf.mxu0
    %v1029 = vadd.f32 %v137, %v1028
    %v1030 = vpop.f32.mrf.mxu0
    %v1031 = vadd.f32 %v137, %v1030
    %1032 = vmatmul.bf16.gmra.mxu0 %v257
    %v1033 = vpop.f32.mrf.mxu0
    %v1034 = vadd.f32 %v137, %v1033
    %v1035 = vpop.f32.mrf.mxu0
    %v1036 = vadd.f32 %v137, %v1035
    %1037 = vmatmul.bf16.gmra.mxu0 %v259
    %v1038 = vpop.f32.mrf.mxu0
    %v1039 = vadd.f32 %v137, %v1038
    %v1040 = vpop.f32.mrf.mxu0
    %v1041 = vadd.f32 %v137, %v1040
    %1042 = vmatmul.bf16.gmra.mxu0 %v261
    %v1043 = vpop.f32.mrf.mxu0
    %v1044 = vadd.f32 %v137, %v1043
    %v1045 = vpop.f32.mrf.mxu0
    %v1046 = vadd.f32 %v137, %v1045
    %1047 = vmatmul.bf16.gmra.mxu0 %v263
    %v1048 = vpop.f32.mrf.mxu0
    %v1049 = vadd.f32 %v137, %v1048
    %v1050 = vpop.f32.mrf.mxu0
    %v1051 = vadd.f32 %v137, %v1050
    %1052 = vmatmul.bf16.gmra.mxu0 %v265
    %v1053 = vpop.f32.mrf.mxu0
    %v1054 = vadd.f32 %v137, %v1053
    %v1055 = vpop.f32.mrf.mxu0
    %v1056 = vadd.f32 %v137, %v1055
    %1057 = vmatmul.bf16.gmra.mxu0 %v267
    %v1058 = vpop.f32.mrf.mxu0
    %v1059 = vadd.f32 %v137, %v1058
    %v1060 = vpop.f32.mrf.mxu0
    %v1061 = vadd.f32 %v137, %v1060
    %1062 = vmatmul.bf16.gmra.mxu0 %v269
    %v1063 = vpop.f32.mrf.mxu0
    %v1064 = vadd.f32 %v137, %v1063
    %v1065 = vpop.f32.mrf.mxu0
    %v1066 = vadd.f32 %v137, %v1065
    %1067 = vdwg.mxu0
    %1068 = vmatpush.bf16.msra.mxu0 %v557
    %1069 = vmatpush.bf16.msra.mxu0 %v553
    %1070 = vmatpush.bf16.msra.mxu0 %v549
    %1071 = vmatpush.bf16.msra.mxu0 %v545
    %1072 = vmatpush.bf16.msra.mxu0 %v541
    %1073 = vmatpush.bf16.msra.mxu0 %v537
    %1074 = vmatpush.bf16.msra.mxu0 %v533
    %1075 = vmatpush.bf16.msra.mxu0 %v529
    %1076 = vmatmul.bf16.gmra.mxu0 %v240
    %v1077 = vpop.f32.mrf.mxu0
    %v1078 = vadd.f32 %v989, %v1077
    %v1079 = vpop.f32.mrf.mxu0
    %v1080 = vadd.f32 %v991, %v1079
    %1081 = vmatmul.bf16.gmra.mxu0 %v242
    %v1082 = vpop.f32.mrf.mxu0
    %v1083 = vadd.f32 %v994, %v1082
    %v1084 = vpop.f32.mrf.mxu0
    %v1085 = vadd.f32 %v996, %v1084
    %1086 = vmatmul.bf16.gmra.mxu0 %v244
    %v1087 = vpop.f32.mrf.mxu0
    %v1088 = vadd.f32 %v999, %v1087
    %v1089 = vpop.f32.mrf.mxu0
    %v1090 = vadd.f32 %v1001, %v1089
    %1091 = vmatmul.bf16.gmra.mxu0 %v246
    %v1092 = vpop.f32.mrf.mxu0
    %v1093 = vadd.f32 %v1004, %v1092
    %v1094 = vpop.f32.mrf.mxu0
    %v1095 = vadd.f32 %v1006, %v1094
    %1096 = vmatmul.bf16.gmra.mxu0 %v248
    %v1097 = vpop.f32.mrf.mxu0
    %v1098 = vadd.f32 %v1009, %v1097
    %v1099 = vpop.f32.mrf.mxu0
    %v1100 = vadd.f32 %v1011, %v1099
    %1101 = vmatmul.bf16.gmra.mxu0 %v250
    %v1102 = vpop.f32.mrf.mxu0
    %v1103 = vadd.f32 %v1014, %v1102
    %v1104 = vpop.f32.mrf.mxu0
    %v1105 = vadd.f32 %v1016, %v1104
    %1106 = vmatmul.bf16.gmra.mxu0 %v252
    %v1107 = vpop.f32.mrf.mxu0
    %v1108 = vadd.f32 %v1019, %v1107
    %v1109 = vpop.f32.mrf.mxu0
    %v1110 = vadd.f32 %v1021, %v1109
    %1111 = vmatmul.bf16.gmra.mxu0 %v254
    %v1112 = vpop.f32.mrf.mxu0
    %v1113 = vadd.f32 %v1024, %v1112
    %v1114 = vpop.f32.mrf.mxu0
    %v1115 = vadd.f32 %v1026, %v1114
    %1116 = vmatmul.bf16.gmra.mxu0 %v256
    %v1117 = vpop.f32.mrf.mxu0
    %v1118 = vadd.f32 %v1029, %v1117
    %v1119 = vpop.f32.mrf.mxu0
    %v1120 = vadd.f32 %v1031, %v1119
    %1121 = vmatmul.bf16.gmra.mxu0 %v258
    %v1122 = vpop.f32.mrf.mxu0
    %v1123 = vadd.f32 %v1034, %v1122
    %v1124 = vpop.f32.mrf.mxu0
    %v1125 = vadd.f32 %v1036, %v1124
    %1126 = vmatmul.bf16.gmra.mxu0 %v260
    %v1127 = vpop.f32.mrf.mxu0
    %v1128 = vadd.f32 %v1039, %v1127
    %v1129 = vpop.f32.mrf.mxu0
    %v1130 = vadd.f32 %v1041, %v1129
    %1131 = vmatmul.bf16.gmra.mxu0 %v262
    %v1132 = vpop.f32.mrf.mxu0
    %v1133 = vadd.f32 %v1044, %v1132
    %v1134 = vpop.f32.mrf.mxu0
    %v1135 = vadd.f32 %v1046, %v1134
    %1136 = vmatmul.bf16.gmra.mxu0 %v264
    %v1137 = vpop.f32.mrf.mxu0
    %v1138 = vadd.f32 %v1049, %v1137
    %v1139 = vpop.f32.mrf.mxu0
    %v1140 = vadd.f32 %v1051, %v1139
    %1141 = vmatmul.bf16.gmra.mxu0 %v266
    %v1142 = vpop.f32.mrf.mxu0
    %v1143 = vadd.f32 %v1054, %v1142
    %v1144 = vpop.f32.mrf.mxu0
    %v1145 = vadd.f32 %v1056, %v1144
    %1146 = vmatmul.bf16.gmra.mxu0 %v268
    %v1147 = vpop.f32.mrf.mxu0
    %v1148 = vadd.f32 %v1059, %v1147
    %v1149 = vpop.f32.mrf.mxu0
    %v1150 = vadd.f32 %v1061, %v1149
    %1151 = vmatmul.bf16.gmra.mxu0 %v270
    %v1152 = vpop.f32.mrf.mxu0
    %v1153 = vadd.f32 %v1064, %v1152
    %v1154 = vpop.f32.mrf.mxu0
    %v1155 = vadd.f32 %v1066, %v1154
    %1156 = vdwg.mxu0
    %1157 = vmatpush.bf16.msra.mxu0 %v526
    %1158 = vmatpush.bf16.msra.mxu0 %v522
    %1159 = vmatpush.bf16.msra.mxu0 %v518
    %1160 = vmatpush.bf16.msra.mxu0 %v514
    %1161 = vmatpush.bf16.msra.mxu0 %v510
    %1162 = vmatpush.bf16.msra.mxu0 %v506
    %1163 = vmatpush.bf16.msra.mxu0 %v502
    %1164 = vmatpush.bf16.msra.mxu0 %v498
    %1165 = vmatmul.bf16.gmra.mxu0 %v239
    %v1166 = vpop.f32.mrf.mxu0
    %v1167 = vadd.f32 %v138, %v1166
    %v1168 = vpop.f32.mrf.mxu0
    %v1169 = vadd.f32 %v138, %v1168
    %1170 = vmatmul.bf16.gmra.mxu0 %v241
    %v1171 = vpop.f32.mrf.mxu0
    %v1172 = vadd.f32 %v138, %v1171
    %v1173 = vpop.f32.mrf.mxu0
    %v1174 = vadd.f32 %v138, %v1173
    %1175 = vmatmul.bf16.gmra.mxu0 %v243
    %v1176 = vpop.f32.mrf.mxu0
    %v1177 = vadd.f32 %v138, %v1176
    %v1178 = vpop.f32.mrf.mxu0
    %v1179 = vadd.f32 %v138, %v1178
    %1180 = vmatmul.bf16.gmra.mxu0 %v245
    %v1181 = vpop.f32.mrf.mxu0
    %v1182 = vadd.f32 %v138, %v1181
    %v1183 = vpop.f32.mrf.mxu0
    %v1184 = vadd.f32 %v138, %v1183
    %1185 = vmatmul.bf16.gmra.mxu0 %v247
    %v1186 = vpop.f32.mrf.mxu0
    %v1187 = vadd.f32 %v138, %v1186
    %v1188 = vpop.f32.mrf.mxu0
    %v1189 = vadd.f32 %v138, %v1188
    %1190 = vmatmul.bf16.gmra.mxu0 %v249
    %v1191 = vpop.f32.mrf.mxu0
    %v1192 = vadd.f32 %v138, %v1191
    %v1193 = vpop.f32.mrf.mxu0
    %v1194 = vadd.f32 %v138, %v1193
    %1195 = vmatmul.bf16.gmra.mxu0 %v251
    %v1196 = vpop.f32.mrf.mxu0
    %v1197 = vadd.f32 %v138, %v1196
    %v1198 = vpop.f32.mrf.mxu0
    %v1199 = vadd.f32 %v138, %v1198
    %1200 = vmatmul.bf16.gmra.mxu0 %v253
    %v1201 = vpop.f32.mrf.mxu0
    %v1202 = vadd.f32 %v138, %v1201
    %v1203 = vpop.f32.mrf.mxu0
    %v1204 = vadd.f32 %v138, %v1203
    %1205 = vmatmul.bf16.gmra.mxu0 %v255
    %v1206 = vpop.f32.mrf.mxu0
    %v1207 = vadd.f32 %v138, %v1206
    %v1208 = vpop.f32.mrf.mxu0
    %v1209 = vadd.f32 %v138, %v1208
    %1210 = vmatmul.bf16.gmra.mxu0 %v257
    %v1211 = vpop.f32.mrf.mxu0
    %v1212 = vadd.f32 %v138, %v1211
    %v1213 = vpop.f32.mrf.mxu0
    %v1214 = vadd.f32 %v138, %v1213
    %1215 = vmatmul.bf16.gmra.mxu0 %v259
    %v1216 = vpop.f32.mrf.mxu0
    %v1217 = vadd.f32 %v138, %v1216
    %v1218 = vpop.f32.mrf.mxu0
    %v1219 = vadd.f32 %v138, %v1218
    %1220 = vmatmul.bf16.gmra.mxu0 %v261
    %v1221 = vpop.f32.mrf.mxu0
    %v1222 = vadd.f32 %v138, %v1221
    %v1223 = vpop.f32.mrf.mxu0
    %v1224 = vadd.f32 %v138, %v1223
    %1225 = vmatmul.bf16.gmra.mxu0 %v263
    %v1226 = vpop.f32.mrf.mxu0
    %v1227 = vadd.f32 %v138, %v1226
    %v1228 = vpop.f32.mrf.mxu0
    %v1229 = vadd.f32 %v138, %v1228
    %1230 = vmatmul.bf16.gmra.mxu0 %v265
    %v1231 = vpop.f32.mrf.mxu0
    %v1232 = vadd.f32 %v138, %v1231
    %v1233 = vpop.f32.mrf.mxu0
    %v1234 = vadd.f32 %v138, %v1233
    %1235 = vmatmul.bf16.gmra.mxu0 %v267
    %v1236 = vpop.f32.mrf.mxu0
    %v1237 = vadd.f32 %v138, %v1236
    %v1238 = vpop.f32.mrf.mxu0
    %v1239 = vadd.f32 %v138, %v1238
    %1240 = vmatmul.bf16.gmra.mxu0 %v269
    %v1241 = vpop.f32.mrf.mxu0
    %v1242 = vadd.f32 %v138, %v1241
    %v1243 = vpop.f32.mrf.mxu0
    %v1244 = vadd.f32 %v138, %v1243
    %1245 = vdwg.mxu0
    %1246 = vmatpush.bf16.msra.mxu0 %v558
    %1247 = vmatpush.bf16.msra.mxu0 %v554
    %1248 = vmatpush.bf16.msra.mxu0 %v550
    %1249 = vmatpush.bf16.msra.mxu0 %v546
    %1250 = vmatpush.bf16.msra.mxu0 %v542
    %1251 = vmatpush.bf16.msra.mxu0 %v538
    %1252 = vmatpush.bf16.msra.mxu0 %v534
    %1253 = vmatpush.bf16.msra.mxu0 %v530
    %1254 = vmatmul.bf16.gmra.mxu0 %v240
    %v1255 = vpop.f32.mrf.mxu0
    %v1256 = vadd.f32 %v1167, %v1255
    %v1257 = vpop.f32.mrf.mxu0
    %v1258 = vadd.f32 %v1169, %v1257
    %1259 = vmatmul.bf16.gmra.mxu0 %v242
    %v1260 = vpop.f32.mrf.mxu0
    %v1261 = vadd.f32 %v1172, %v1260
    %v1262 = vpop.f32.mrf.mxu0
    %v1263 = vadd.f32 %v1174, %v1262
    %1264 = vmatmul.bf16.gmra.mxu0 %v244
    %v1265 = vpop.f32.mrf.mxu0
    %v1266 = vadd.f32 %v1177, %v1265
    %v1267 = vpop.f32.mrf.mxu0
    %v1268 = vadd.f32 %v1179, %v1267
    %1269 = vmatmul.bf16.gmra.mxu0 %v246
    %v1270 = vpop.f32.mrf.mxu0
    %v1271 = vadd.f32 %v1182, %v1270
    %v1272 = vpop.f32.mrf.mxu0
    %v1273 = vadd.f32 %v1184, %v1272
    %1274 = vmatmul.bf16.gmra.mxu0 %v248
    %v1275 = vpop.f32.mrf.mxu0
    %v1276 = vadd.f32 %v1187, %v1275
    %v1277 = vpop.f32.mrf.mxu0
    %v1278 = vadd.f32 %v1189, %v1277
    %1279 = vmatmul.bf16.gmra.mxu0 %v250
    %v1280 = vpop.f32.mrf.mxu0
    %v1281 = vadd.f32 %v1192, %v1280
    %v1282 = vpop.f32.mrf.mxu0
    %v1283 = vadd.f32 %v1194, %v1282
    %1284 = vmatmul.bf16.gmra.mxu0 %v252
    %v1285 = vpop.f32.mrf.mxu0
    %v1286 = vadd.f32 %v1197, %v1285
    %v1287 = vpop.f32.mrf.mxu0
    %v1288 = vadd.f32 %v1199, %v1287
    %1289 = vmatmul.bf16.gmra.mxu0 %v254
    %v1290 = vpop.f32.mrf.mxu0
    %v1291 = vadd.f32 %v1202, %v1290
    %v1292 = vpop.f32.mrf.mxu0
    %v1293 = vadd.f32 %v1204, %v1292
    %1294 = vmatmul.bf16.gmra.mxu0 %v256
    %v1295 = vpop.f32.mrf.mxu0
    %v1296 = vadd.f32 %v1207, %v1295
    %v1297 = vpop.f32.mrf.mxu0
    %v1298 = vadd.f32 %v1209, %v1297
    %1299 = vmatmul.bf16.gmra.mxu0 %v258
    %v1300 = vpop.f32.mrf.mxu0
    %v1301 = vadd.f32 %v1212, %v1300
    %v1302 = vpop.f32.mrf.mxu0
    %v1303 = vadd.f32 %v1214, %v1302
    %1304 = vmatmul.bf16.gmra.mxu0 %v260
    %v1305 = vpop.f32.mrf.mxu0
    %v1306 = vadd.f32 %v1217, %v1305
    %v1307 = vpop.f32.mrf.mxu0
    %v1308 = vadd.f32 %v1219, %v1307
    %1309 = vmatmul.bf16.gmra.mxu0 %v262
    %v1310 = vpop.f32.mrf.mxu0
    %v1311 = vadd.f32 %v1222, %v1310
    %v1312 = vpop.f32.mrf.mxu0
    %v1313 = vadd.f32 %v1224, %v1312
    %1314 = vmatmul.bf16.gmra.mxu0 %v264
    %v1315 = vpop.f32.mrf.mxu0
    %v1316 = vadd.f32 %v1227, %v1315
    %v1317 = vpop.f32.mrf.mxu0
    %v1318 = vadd.f32 %v1229, %v1317
    %1319 = vmatmul.bf16.gmra.mxu0 %v266
    %v1320 = vpop.f32.mrf.mxu0
    %v1321 = vadd.f32 %v1232, %v1320
    %v1322 = vpop.f32.mrf.mxu0
    %v1323 = vadd.f32 %v1234, %v1322
    %1324 = vmatmul.bf16.gmra.mxu0 %v268
    %v1325 = vpop.f32.mrf.mxu0
    %v1326 = vadd.f32 %v1237, %v1325
    %v1327 = vpop.f32.mrf.mxu0
    %v1328 = vadd.f32 %v1239, %v1327
    %1329 = vmatmul.bf16.gmra.mxu0 %v270
    %v1330 = vpop.f32.mrf.mxu0
    %v1331 = vadd.f32 %v1242, %v1330
    %v1332 = vpop.f32.mrf.mxu0
    %v1333 = vadd.f32 %v1244, %v1332
    %1334 = vdwg.mxu0
    %v1335 = vmax.f32 %v722, 0.0
    %v1336 = vmax.f32 %v900, 0.0
    %v1337 = vmax.f32 %v1078, 0.0
    %v1338 = vmax.f32 %v1256, 0.0
    %v1339 = vmax.f32 %v724, 0.0
    %v1340 = vmax.f32 %v902, 0.0
    %v1341 = vmax.f32 %v1080, 0.0
    %v1342 = vmax.f32 %v1258, 0.0
    %v1343 = vmax.f32 %v727, 0.0
    %v1344 = vmax.f32 %v905, 0.0
    %v1345 = vmax.f32 %v1083, 0.0
    %v1346 = vmax.f32 %v1261, 0.0
    %v1347 = vmax.f32 %v729, 0.0
    %v1348 = vmax.f32 %v907, 0.0
    %v1349 = vmax.f32 %v1085, 0.0
    %v1350 = vmax.f32 %v1263, 0.0
    %v1351 = vmax.f32 %v732, 0.0
    %v1352 = vmax.f32 %v910, 0.0
    %v1353 = vmax.f32 %v1088, 0.0
    %v1354 = vmax.f32 %v1266, 0.0
    %v1355 = vmax.f32 %v734, 0.0
    %v1356 = vmax.f32 %v912, 0.0
    %v1357 = vmax.f32 %v1090, 0.0
    %v1358 = vmax.f32 %v1268, 0.0
    %v1359 = vmax.f32 %v737, 0.0
    %v1360 = vmax.f32 %v915, 0.0
    %v1361 = vmax.f32 %v1093, 0.0
    %v1362 = vmax.f32 %v1271, 0.0
    %v1363 = vmax.f32 %v739, 0.0
    %v1364 = vmax.f32 %v917, 0.0
    %v1365 = vmax.f32 %v1095, 0.0
    %v1366 = vmax.f32 %v1273, 0.0
    %v1367 = vmax.f32 %v742, 0.0
    %v1368 = vmax.f32 %v920, 0.0
    %v1369 = vmax.f32 %v1098, 0.0
    %v1370 = vmax.f32 %v1276, 0.0
    %v1371 = vmax.f32 %v744, 0.0
    %v1372 = vmax.f32 %v922, 0.0
    %v1373 = vmax.f32 %v1100, 0.0
    %v1374 = vmax.f32 %v1278, 0.0
    %v1375 = vmax.f32 %v747, 0.0
    %v1376 = vmax.f32 %v925, 0.0
    %v1377 = vmax.f32 %v1103, 0.0
    %v1378 = vmax.f32 %v1281, 0.0
    %v1379 = vmax.f32 %v749, 0.0
    %v1380 = vmax.f32 %v927, 0.0
    %v1381 = vmax.f32 %v1105, 0.0
    %v1382 = vmax.f32 %v1283, 0.0
    %v1383 = vmax.f32 %v752, 0.0
    %v1384 = vmax.f32 %v930, 0.0
    %v1385 = vmax.f32 %v1108, 0.0
    %v1386 = vmax.f32 %v1286, 0.0
    %v1387 = vmax.f32 %v754, 0.0
    %v1388 = vmax.f32 %v932, 0.0
    %v1389 = vmax.f32 %v1110, 0.0
    %v1390 = vmax.f32 %v1288, 0.0
    %v1391 = vmax.f32 %v757, 0.0
    %v1392 = vmax.f32 %v935, 0.0
    %v1393 = vmax.f32 %v1113, 0.0
    %v1394 = vmax.f32 %v1291, 0.0
    %v1395 = vmax.f32 %v759, 0.0
    %v1396 = vmax.f32 %v937, 0.0
    %v1397 = vmax.f32 %v1115, 0.0
    %v1398 = vmax.f32 %v1293, 0.0
    %v1399 = vmax.f32 %v762, 0.0
    %v1400 = vmax.f32 %v940, 0.0
    %v1401 = vmax.f32 %v1118, 0.0
    %v1402 = vmax.f32 %v1296, 0.0
    %v1403 = vmax.f32 %v764, 0.0
    %v1404 = vmax.f32 %v942, 0.0
    %v1405 = vmax.f32 %v1120, 0.0
    %v1406 = vmax.f32 %v1298, 0.0
    %v1407 = vmax.f32 %v767, 0.0
    %v1408 = vmax.f32 %v945, 0.0
    %v1409 = vmax.f32 %v1123, 0.0
    %v1410 = vmax.f32 %v1301, 0.0
    %v1411 = vmax.f32 %v769, 0.0
    %v1412 = vmax.f32 %v947, 0.0
    %v1413 = vmax.f32 %v1125, 0.0
    %v1414 = vmax.f32 %v1303, 0.0
    %v1415 = vmax.f32 %v772, 0.0
    %v1416 = vmax.f32 %v950, 0.0
    %v1417 = vmax.f32 %v1128, 0.0
    %v1418 = vmax.f32 %v1306, 0.0
    %v1419 = vmax.f32 %v774, 0.0
    %v1420 = vmax.f32 %v952, 0.0
    %v1421 = vmax.f32 %v1130, 0.0
    %v1422 = vmax.f32 %v1308, 0.0
    %v1423 = vmax.f32 %v777, 0.0
    %v1424 = vmax.f32 %v955, 0.0
    %v1425 = vmax.f32 %v1133, 0.0
    %v1426 = vmax.f32 %v1311, 0.0
    %v1427 = vmax.f32 %v779, 0.0
    %v1428 = vmax.f32 %v957, 0.0
    %v1429 = vmax.f32 %v1135, 0.0
    %v1430 = vmax.f32 %v1313, 0.0
    %v1431 = vmax.f32 %v782, 0.0
    %v1432 = vmax.f32 %v960, 0.0
    %v1433 = vmax.f32 %v1138, 0.0
    %v1434 = vmax.f32 %v1316, 0.0
    %v1435 = vmax.f32 %v784, 0.0
    %v1436 = vmax.f32 %v962, 0.0
    %v1437 = vmax.f32 %v1140, 0.0
    %v1438 = vmax.f32 %v1318, 0.0
    %v1439 = vmax.f32 %v787, 0.0
    %v1440 = vmax.f32 %v965, 0.0
    %v1441 = vmax.f32 %v1143, 0.0
    %v1442 = vmax.f32 %v1321, 0.0
    %v1443 = vmax.f32 %v789, 0.0
    %v1444 = vmax.f32 %v967, 0.0
    %v1445 = vmax.f32 %v1145, 0.0
    %v1446 = vmax.f32 %v1323, 0.0
    %v1447 = vmax.f32 %v792, 0.0
    %v1448 = vmax.f32 %v970, 0.0
    %v1449 = vmax.f32 %v1148, 0.0
    %v1450 = vmax.f32 %v1326, 0.0
    %v1451 = vmax.f32 %v794, 0.0
    %v1452 = vmax.f32 %v972, 0.0
    %v1453 = vmax.f32 %v1150, 0.0
    %v1454 = vmax.f32 %v1328, 0.0
    %v1455 = vmax.f32 %v797, 0.0
    %v1456 = vmax.f32 %v975, 0.0
    %v1457 = vmax.f32 %v1153, 0.0
    %v1458 = vmax.f32 %v1331, 0.0
    %v1459 = vmax.f32 %v799, 0.0
    %v1460 = vmax.f32 %v977, 0.0
    %v1461 = vmax.f32 %v1155, 0.0
    %v1462 = vmax.f32 %v1333, 0.0
    %v1463 = vpack.c.bf16 %v1339, %v1335
    %v1464 = vpack.c.bf16 %v1340, %v1336
    %v1465 = vpack.c.bf16 %v1341, %v1337
    %v1466 = vpack.c.bf16 %v1342, %v1338
    %v1467 = vpack.c.bf16 %v1347, %v1343
    %v1468 = vpack.c.bf16 %v1348, %v1344
    %v1469 = vpack.c.bf16 %v1349, %v1345
    %v1470 = vpack.c.bf16 %v1350, %v1346
    %v1471 = vpack.c.bf16 %v1355, %v1351
    %v1472 = vpack.c.bf16 %v1356, %v1352
    %v1473 = vpack.c.bf16 %v1357, %v1353
    %v1474 = vpack.c.bf16 %v1358, %v1354
    %v1475 = vpack.c.bf16 %v1363, %v1359
    %v1476 = vpack.c.bf16 %v1364, %v1360
    %v1477 = vpack.c.bf16 %v1365, %v1361
    %v1478 = vpack.c.bf16 %v1366, %v1362
    %v1479 = vpack.c.bf16 %v1371, %v1367
    %v1480 = vpack.c.bf16 %v1372, %v1368
    %v1481 = vpack.c.bf16 %v1373, %v1369
    %v1482 = vpack.c.bf16 %v1374, %v1370
    %v1483 = vpack.c.bf16 %v1379, %v1375
    %v1484 = vpack.c.bf16 %v1380, %v1376
    %v1485 = vpack.c.bf16 %v1381, %v1377
    %v1486 = vpack.c.bf16 %v1382, %v1378
    %v1487 = vpack.c.bf16 %v1387, %v1383
    %v1488 = vpack.c.bf16 %v1388, %v1384
    %v1489 = vpack.c.bf16 %v1389, %v1385
    %v1490 = vpack.c.bf16 %v1390, %v1386
    %v1491 = vpack.c.bf16 %v1395, %v1391
    %v1492 = vpack.c.bf16 %v1396, %v1392
    %v1493 = vpack.c.bf16 %v1397, %v1393
    %v1494 = vpack.c.bf16 %v1398, %v1394
    %v1495 = vpack.c.bf16 %v1403, %v1399
    %v1496 = vpack.c.bf16 %v1404, %v1400
    %v1497 = vpack.c.bf16 %v1405, %v1401
    %v1498 = vpack.c.bf16 %v1406, %v1402
    %v1499 = vpack.c.bf16 %v1411, %v1407
    %v1500 = vpack.c.bf16 %v1412, %v1408
    %v1501 = vpack.c.bf16 %v1413, %v1409
    %v1502 = vpack.c.bf16 %v1414, %v1410
    %v1503 = vpack.c.bf16 %v1419, %v1415
    %v1504 = vpack.c.bf16 %v1420, %v1416
    %v1505 = vpack.c.bf16 %v1421, %v1417
    %v1506 = vpack.c.bf16 %v1422, %v1418
    %v1507 = vpack.c.bf16 %v1427, %v1423
    %v1508 = vpack.c.bf16 %v1428, %v1424
    %v1509 = vpack.c.bf16 %v1429, %v1425
    %v1510 = vpack.c.bf16 %v1430, %v1426
    %v1511 = vpack.c.bf16 %v1435, %v1431
    %v1512 = vpack.c.bf16 %v1436, %v1432
    %v1513 = vpack.c.bf16 %v1437, %v1433
    %v1514 = vpack.c.bf16 %v1438, %v1434
    %v1515 = vpack.c.bf16 %v1443, %v1439
    %v1516 = vpack.c.bf16 %v1444, %v1440
    %v1517 = vpack.c.bf16 %v1445, %v1441
    %v1518 = vpack.c.bf16 %v1446, %v1442
    %v1519 = vpack.c.bf16 %v1451, %v1447
    %v1520 = vpack.c.bf16 %v1452, %v1448
    %v1521 = vpack.c.bf16 %v1453, %v1449
    %v1522 = vpack.c.bf16 %v1454, %v1450
    %v1523 = vpack.c.bf16 %v1459, %v1455
    %v1524 = vpack.c.bf16 %v1460, %v1456
    %v1525 = vpack.c.bf16 %v1461, %v1457
    %v1526 = vpack.c.bf16 %v1462, %v1458
    %v1527 = vld [vmem:[#allocation2] sm:$0xff]
    %v1528 = vld [vmem:[#allocation2 + $0x8] sm:$0xff]
    %v1529 = vld [vmem:[#allocation2 + $0x10] sm:$0xff]
    %v1530 = vld [vmem:[#allocation2 + $0x18] sm:$0xff]
    %v1531 = vld [vmem:[#allocation2 + $0x20] sm:$0xff]
    %v1532 = vld [vmem:[#allocation2 + $0x28] sm:$0xff]
    %v1533 = vld [vmem:[#allocation2 + $0x30] sm:$0xff]
    %v1534 = vld [vmem:[#allocation2 + $0x38] sm:$0xff]
    %v1535 = vld [vmem:[#allocation2 + $0x40] sm:$0xff]
    %v1536 = vld [vmem:[#allocation2 + $0x48] sm:$0xff]
    %v1537 = vld [vmem:[#allocation2 + $0x50] sm:$0xff]
    %v1538 = vld [vmem:[#allocation2 + $0x58] sm:$0xff]
    %v1539 = vld [vmem:[#allocation2 + $0x60] sm:$0xff]
    %v1540 = vld [vmem:[#allocation2 + $0x68] sm:$0xff]
    %v1541 = vld [vmem:[#allocation2 + $0x70] sm:$0xff]
    %v1542 = vld [vmem:[#allocation2 + $0x78] sm:$0xff]
    %v1543 = vld [vmem:[#allocation2 + $0x80] sm:$0xff]
    %v1544 = vld [vmem:[#allocation2 + $0x88] sm:$0xff]
    %v1545 = vld [vmem:[#allocation2 + $0x90] sm:$0xff]
    %v1546 = vld [vmem:[#allocation2 + $0x98] sm:$0xff]
    %v1547 = vld [vmem:[#allocation2 + $0xa0] sm:$0xff]
    %v1548 = vld [vmem:[#allocation2 + $0xa8] sm:$0xff]
    %v1549 = vld [vmem:[#allocation2 + $0xb0] sm:$0xff]
    %v1550 = vld [vmem:[#allocation2 + $0xb8] sm:$0xff]
    %v1551 = vld [vmem:[#allocation2 + $0xc0] sm:$0xff]
    %v1552 = vld [vmem:[#allocation2 + $0xc8] sm:$0xff]
    %v1553 = vld [vmem:[#allocation2 + $0xd0] sm:$0xff]
    %v1554 = vld [vmem:[#allocation2 + $0xd8] sm:$0xff]
    %v1555 = vld [vmem:[#allocation2 + $0xe0] sm:$0xff]
    %v1556 = vld [vmem:[#allocation2 + $0xe8] sm:$0xff]
    %v1557 = vld [vmem:[#allocation2 + $0xf0] sm:$0xff]
    %v1558 = vld [vmem:[#allocation2 + $0xf8] sm:$0xff]
    %v1559 = vld [vmem:[#allocation2 + $0x100] sm:$0xff]
    %v1560 = vld [vmem:[#allocation2 + $0x108] sm:$0xff]
    %v1561 = vld [vmem:[#allocation2 + $0x110] sm:$0xff]
    %v1562 = vld [vmem:[#allocation2 + $0x118] sm:$0xff]
    %v1563 = vld [vmem:[#allocation2 + $0x120] sm:$0xff]
    %v1564 = vld [vmem:[#allocation2 + $0x128] sm:$0xff]
    %v1565 = vld [vmem:[#allocation2 + $0x130] sm:$0xff]
    %v1566 = vld [vmem:[#allocation2 + $0x138] sm:$0xff]
    %v1567 = vld [vmem:[#allocation2 + $0x140] sm:$0xff]
    %v1568 = vld [vmem:[#allocation2 + $0x148] sm:$0xff]
    %v1569 = vld [vmem:[#allocation2 + $0x150] sm:$0xff]
    %v1570 = vld [vmem:[#allocation2 + $0x158] sm:$0xff]
    %v1571 = vld [vmem:[#allocation2 + $0x160] sm:$0xff]
    %v1572 = vld [vmem:[#allocation2 + $0x168] sm:$0xff]
    %v1573 = vld [vmem:[#allocation2 + $0x170] sm:$0xff]
    %v1574 = vld [vmem:[#allocation2 + $0x178] sm:$0xff]
    %v1575 = vld [vmem:[#allocation2 + $0x180] sm:$0xff]
    %v1576 = vld [vmem:[#allocation2 + $0x188] sm:$0xff]
    %v1577 = vld [vmem:[#allocation2 + $0x190] sm:$0xff]
    %v1578 = vld [vmem:[#allocation2 + $0x198] sm:$0xff]
    %v1579 = vld [vmem:[#allocation2 + $0x1a0] sm:$0xff]
    %v1580 = vld [vmem:[#allocation2 + $0x1a8] sm:$0xff]
    %v1581 = vld [vmem:[#allocation2 + $0x1b0] sm:$0xff]
    %v1582 = vld [vmem:[#allocation2 + $0x1b8] sm:$0xff]
    %v1583 = vld [vmem:[#allocation2 + $0x1c0] sm:$0xff]
    %v1584 = vld [vmem:[#allocation2 + $0x1c8] sm:$0xff]
    %v1585 = vld [vmem:[#allocation2 + $0x1d0] sm:$0xff]
    %v1586 = vld [vmem:[#allocation2 + $0x1d8] sm:$0xff]
    %v1587 = vld [vmem:[#allocation2 + $0x1e0] sm:$0xff]
    %v1588 = vld [vmem:[#allocation2 + $0x1e8] sm:$0xff]
    %v1589 = vld [vmem:[#allocation2 + $0x1f0] sm:$0xff]
    %v1590 = vld [vmem:[#allocation2 + $0x1f8] sm:$0xff]
    %v1591 = vld [vmem:[%s4] sm:$0x3]
    %v1593 = vperm.slane %v1591, 0
    %v1594 = vperm.slane %v1591, 1
    %v1661 = vunpack.c.l.b16 %v1527
    %v1662 = vunpack.c.h.b16 %v1527
    %v1663 = vunpack.c.l.b16 %v1528
    %v1664 = vunpack.c.h.b16 %v1528
    %v1665 = vunpack.c.l.b16 %v1529
    %v1666 = vunpack.c.h.b16 %v1529
    %v1667 = vunpack.c.l.b16 %v1530
    %v1668 = vunpack.c.h.b16 %v1530
    %v1669 = vunpack.c.l.b16 %v1531
    %v1670 = vunpack.c.h.b16 %v1531
    %v1671 = vunpack.c.l.b16 %v1532
    %v1672 = vunpack.c.h.b16 %v1532
    %v1673 = vunpack.c.l.b16 %v1533
    %v1674 = vunpack.c.h.b16 %v1533
    %v1675 = vunpack.c.l.b16 %v1534
    %v1676 = vunpack.c.h.b16 %v1534
    %v1677 = vunpack.c.l.b16 %v1535
    %v1678 = vunpack.c.h.b16 %v1535
    %v1679 = vunpack.c.l.b16 %v1536
    %v1680 = vunpack.c.h.b16 %v1536
    %v1681 = vunpack.c.l.b16 %v1537
    %v1682 = vunpack.c.h.b16 %v1537
    %v1683 = vunpack.c.l.b16 %v1538
    %v1684 = vunpack.c.h.b16 %v1538
    %v1685 = vunpack.c.l.b16 %v1539
    %v1686 = vunpack.c.h.b16 %v1539
    %v1687 = vunpack.c.l.b16 %v1540
    %v1688 = vunpack.c.h.b16 %v1540
    %v1689 = vunpack.c.l.b16 %v1541
    %v1690 = vunpack.c.h.b16 %v1541
    %v1691 = vunpack.c.l.b16 %v1542
    %v1692 = vunpack.c.h.b16 %v1542
    %v1693 = vunpack.c.l.b16 %v1543
    %v1694 = vunpack.c.h.b16 %v1543
    %v1695 = vunpack.c.l.b16 %v1544
    %v1696 = vunpack.c.h.b16 %v1544
    %v1697 = vunpack.c.l.b16 %v1545
    %v1698 = vunpack.c.h.b16 %v1545
    %v1699 = vunpack.c.l.b16 %v1546
    %v1700 = vunpack.c.h.b16 %v1546
    %v1701 = vunpack.c.l.b16 %v1547
    %v1702 = vunpack.c.h.b16 %v1547
    %v1703 = vunpack.c.l.b16 %v1548
    %v1704 = vunpack.c.h.b16 %v1548
    %v1705 = vunpack.c.l.b16 %v1549
    %v1706 = vunpack.c.h.b16 %v1549
    %v1707 = vunpack.c.l.b16 %v1550
    %v1708 = vunpack.c.h.b16 %v1550
    %v1709 = vunpack.c.l.b16 %v1551
    %v1710 = vunpack.c.h.b16 %v1551
    %v1711 = vunpack.c.l.b16 %v1552
    %v1712 = vunpack.c.h.b16 %v1552
    %v1713 = vunpack.c.l.b16 %v1553
    %v1714 = vunpack.c.h.b16 %v1553
    %v1715 = vunpack.c.l.b16 %v1554
    %v1716 = vunpack.c.h.b16 %v1554
    %v1717 = vunpack.c.l.b16 %v1555
    %v1718 = vunpack.c.h.b16 %v1555
    %v1719 = vunpack.c.l.b16 %v1556
    %v1720 = vunpack.c.h.b16 %v1556
    %v1721 = vunpack.c.l.b16 %v1557
    %v1722 = vunpack.c.h.b16 %v1557
    %v1723 = vunpack.c.l.b16 %v1558
    %v1724 = vunpack.c.h.b16 %v1558
    %v1725 = vunpack.c.l.b16 %v1559
    %v1726 = vunpack.c.h.b16 %v1559
    %v1727 = vunpack.c.l.b16 %v1560
    %v1728 = vunpack.c.h.b16 %v1560
    %v1729 = vunpack.c.l.b16 %v1561
    %v1730 = vunpack.c.h.b16 %v1561
    %v1731 = vunpack.c.l.b16 %v1562
    %v1732 = vunpack.c.h.b16 %v1562
    %v1733 = vunpack.c.l.b16 %v1563
    %v1734 = vunpack.c.h.b16 %v1563
    %v1735 = vunpack.c.l.b16 %v1564
    %v1736 = vunpack.c.h.b16 %v1564
    %v1737 = vunpack.c.l.b16 %v1565
    %v1738 = vunpack.c.h.b16 %v1565
    %v1739 = vunpack.c.l.b16 %v1566
    %v1740 = vunpack.c.h.b16 %v1566
    %v1741 = vunpack.c.l.b16 %v1567
    %v1742 = vunpack.c.h.b16 %v1567
    %v1743 = vunpack.c.l.b16 %v1568
    %v1744 = vunpack.c.h.b16 %v1568
    %v1745 = vunpack.c.l.b16 %v1569
    %v1746 = vunpack.c.h.b16 %v1569
    %v1747 = vunpack.c.l.b16 %v1570
    %v1748 = vunpack.c.h.b16 %v1570
    %v1749 = vunpack.c.l.b16 %v1571
    %v1750 = vunpack.c.h.b16 %v1571
    %v1751 = vunpack.c.l.b16 %v1572
    %v1752 = vunpack.c.h.b16 %v1572
    %v1753 = vunpack.c.l.b16 %v1573
    %v1754 = vunpack.c.h.b16 %v1573
    %v1755 = vunpack.c.l.b16 %v1574
    %v1756 = vunpack.c.h.b16 %v1574
    %v1757 = vunpack.c.l.b16 %v1575
    %v1758 = vunpack.c.h.b16 %v1575
    %v1759 = vunpack.c.l.b16 %v1576
    %v1760 = vunpack.c.h.b16 %v1576
    %v1761 = vunpack.c.l.b16 %v1577
    %v1762 = vunpack.c.h.b16 %v1577
    %v1763 = vunpack.c.l.b16 %v1578
    %v1764 = vunpack.c.h.b16 %v1578
    %v1765 = vunpack.c.l.b16 %v1579
    %v1766 = vunpack.c.h.b16 %v1579
    %v1767 = vunpack.c.l.b16 %v1580
    %v1768 = vunpack.c.h.b16 %v1580
    %v1769 = vunpack.c.l.b16 %v1581
    %v1770 = vunpack.c.h.b16 %v1581
    %v1771 = vunpack.c.l.b16 %v1582
    %v1772 = vunpack.c.h.b16 %v1582
    %v1773 = vunpack.c.l.b16 %v1583
    %v1774 = vunpack.c.h.b16 %v1583
    %v1775 = vunpack.c.l.b16 %v1584
    %v1776 = vunpack.c.h.b16 %v1584
    %v1777 = vunpack.c.l.b16 %v1585
    %v1778 = vunpack.c.h.b16 %v1585
    %v1779 = vunpack.c.l.b16 %v1586
    %v1780 = vunpack.c.h.b16 %v1586
    %v1781 = vunpack.c.l.b16 %v1587
    %v1782 = vunpack.c.h.b16 %v1587
    %v1783 = vunpack.c.l.b16 %v1588
    %v1784 = vunpack.c.h.b16 %v1588
    %v1785 = vunpack.c.l.b16 %v1589
    %v1786 = vunpack.c.h.b16 %v1589
    %v1787 = vunpack.c.l.b16 %v1590
    %v1788 = vunpack.c.h.b16 %v1590
    %v1789 = vpack.c.b16 %v1663, %v1661
    %v1790 = vpack.c.b16 %v1664, %v1662
    %v1791 = vpack.c.b16 %v1667, %v1665
    %v1792 = vpack.c.b16 %v1668, %v1666
    %v1793 = vpack.c.b16 %v1671, %v1669
    %v1794 = vpack.c.b16 %v1672, %v1670
    %v1795 = vpack.c.b16 %v1675, %v1673
    %v1796 = vpack.c.b16 %v1676, %v1674
    %v1797 = vpack.c.b16 %v1679, %v1677
    %v1798 = vpack.c.b16 %v1680, %v1678
    %v1799 = vpack.c.b16 %v1683, %v1681
    %v1800 = vpack.c.b16 %v1684, %v1682
    %v1801 = vpack.c.b16 %v1687, %v1685
    %v1802 = vpack.c.b16 %v1688, %v1686
    %v1803 = vpack.c.b16 %v1691, %v1689
    %v1804 = vpack.c.b16 %v1692, %v1690
    %v1805 = vpack.c.b16 %v1695, %v1693
    %v1806 = vpack.c.b16 %v1696, %v1694
    %v1807 = vpack.c.b16 %v1699, %v1697
    %v1808 = vpack.c.b16 %v1700, %v1698
    %v1809 = vpack.c.b16 %v1703, %v1701
    %v1810 = vpack.c.b16 %v1704, %v1702
    %v1811 = vpack.c.b16 %v1707, %v1705
    %v1812 = vpack.c.b16 %v1708, %v1706
    %v1813 = vpack.c.b16 %v1711, %v1709
    %v1814 = vpack.c.b16 %v1712, %v1710
    %v1815 = vpack.c.b16 %v1715, %v1713
    %v1816 = vpack.c.b16 %v1716, %v1714
    %v1817 = vpack.c.b16 %v1719, %v1717
    %v1818 = vpack.c.b16 %v1720, %v1718
    %v1819 = vpack.c.b16 %v1723, %v1721
    %v1820 = vpack.c.b16 %v1724, %v1722
    %v1821 = vpack.c.b16 %v1727, %v1725
    %v1822 = vpack.c.b16 %v1728, %v1726
    %v1823 = vpack.c.b16 %v1731, %v1729
    %v1824 = vpack.c.b16 %v1732, %v1730
    %v1825 = vpack.c.b16 %v1735, %v1733
    %v1826 = vpack.c.b16 %v1736, %v1734
    %v1827 = vpack.c.b16 %v1739, %v1737
    %v1828 = vpack.c.b16 %v1740, %v1738
    %v1829 = vpack.c.b16 %v1743, %v1741
    %v1830 = vpack.c.b16 %v1744, %v1742
    %v1831 = vpack.c.b16 %v1747, %v1745
    %v1832 = vpack.c.b16 %v1748, %v1746
    %v1833 = vpack.c.b16 %v1751, %v1749
    %v1834 = vpack.c.b16 %v1752, %v1750
    %v1835 = vpack.c.b16 %v1755, %v1753
    %v1836 = vpack.c.b16 %v1756, %v1754
    %v1837 = vpack.c.b16 %v1759, %v1757
    %v1838 = vpack.c.b16 %v1760, %v1758
    %v1839 = vpack.c.b16 %v1763, %v1761
    %v1840 = vpack.c.b16 %v1764, %v1762
    %v1841 = vpack.c.b16 %v1767, %v1765
    %v1842 = vpack.c.b16 %v1768, %v1766
    %v1843 = vpack.c.b16 %v1771, %v1769
    %v1844 = vpack.c.b16 %v1772, %v1770
    %v1845 = vpack.c.b16 %v1775, %v1773
    %v1846 = vpack.c.b16 %v1776, %v1774
    %v1847 = vpack.c.b16 %v1779, %v1777
    %v1848 = vpack.c.b16 %v1780, %v1778
    %v1849 = vpack.c.b16 %v1783, %v1781
    %v1850 = vpack.c.b16 %v1784, %v1782
    %v1851 = vpack.c.b16 %v1787, %v1785
    %v1852 = vpack.c.b16 %v1788, %v1786
    %1917 = vmatpush.bf16.msra.mxu0 %v1803
    %1918 = vmatpush.bf16.msra.mxu0 %v1801
    %1919 = vmatpush.bf16.msra.mxu0 %v1799
    %1920 = vmatpush.bf16.msra.mxu0 %v1797
    %1921 = vmatpush.bf16.msra.mxu0 %v1795
    %1922 = vmatpush.bf16.msra.mxu0 %v1793
    %1923 = vmatpush.bf16.msra.mxu0 %v1791
    %1924 = vmatpush.bf16.msra.mxu0 %v1789
    %1925 = vmatmul.bf16.gmra.mxu0 %v1463
    %v1926 = vpop.f32.mrf.mxu0
    %v1927 = vadd.f32 %v1593, %v1926
    %v1928 = vpop.f32.mrf.mxu0
    %v1929 = vadd.f32 %v1593, %v1928
    %1930 = vmatmul.bf16.gmra.mxu0 %v1467
    %v1931 = vpop.f32.mrf.mxu0
    %v1932 = vadd.f32 %v1593, %v1931
    %v1933 = vpop.f32.mrf.mxu0
    %v1934 = vadd.f32 %v1593, %v1933
    %1935 = vmatmul.bf16.gmra.mxu0 %v1471
    %v1936 = vpop.f32.mrf.mxu0
    %v1937 = vadd.f32 %v1593, %v1936
    %v1938 = vpop.f32.mrf.mxu0
    %v1939 = vadd.f32 %v1593, %v1938
    %1940 = vmatmul.bf16.gmra.mxu0 %v1475
    %v1941 = vpop.f32.mrf.mxu0
    %v1942 = vadd.f32 %v1593, %v1941
    %v1943 = vpop.f32.mrf.mxu0
    %v1944 = vadd.f32 %v1593, %v1943
    %1945 = vmatmul.bf16.gmra.mxu0 %v1479
    %v1946 = vpop.f32.mrf.mxu0
    %v1947 = vadd.f32 %v1593, %v1946
    %v1948 = vpop.f32.mrf.mxu0
    %v1949 = vadd.f32 %v1593, %v1948
    %1950 = vmatmul.bf16.gmra.mxu0 %v1483
    %v1951 = vpop.f32.mrf.mxu0
    %v1952 = vadd.f32 %v1593, %v1951
    %v1953 = vpop.f32.mrf.mxu0
    %v1954 = vadd.f32 %v1593, %v1953
    %1955 = vmatmul.bf16.gmra.mxu0 %v1487
    %v1956 = vpop.f32.mrf.mxu0
    %v1957 = vadd.f32 %v1593, %v1956
    %v1958 = vpop.f32.mrf.mxu0
    %v1959 = vadd.f32 %v1593, %v1958
    %1960 = vmatmul.bf16.gmra.mxu0 %v1491
    %v1961 = vpop.f32.mrf.mxu0
    %v1962 = vadd.f32 %v1593, %v1961
    %v1963 = vpop.f32.mrf.mxu0
    %v1964 = vadd.f32 %v1593, %v1963
    %1965 = vmatmul.bf16.gmra.mxu0 %v1495
    %v1966 = vpop.f32.mrf.mxu0
    %v1967 = vadd.f32 %v1593, %v1966
    %v1968 = vpop.f32.mrf.mxu0
    %v1969 = vadd.f32 %v1593, %v1968
    %1970 = vmatmul.bf16.gmra.mxu0 %v1499
    %v1971 = vpop.f32.mrf.mxu0
    %v1972 = vadd.f32 %v1593, %v1971
    %v1973 = vpop.f32.mrf.mxu0
    %v1974 = vadd.f32 %v1593, %v1973
    %1975 = vmatmul.bf16.gmra.mxu0 %v1503
    %v1976 = vpop.f32.mrf.mxu0
    %v1977 = vadd.f32 %v1593, %v1976
    %v1978 = vpop.f32.mrf.mxu0
    %v1979 = vadd.f32 %v1593, %v1978
    %1980 = vmatmul.bf16.gmra.mxu0 %v1507
    %v1981 = vpop.f32.mrf.mxu0
    %v1982 = vadd.f32 %v1593, %v1981
    %v1983 = vpop.f32.mrf.mxu0
    %v1984 = vadd.f32 %v1593, %v1983
    %1985 = vmatmul.bf16.gmra.mxu0 %v1511
    %v1986 = vpop.f32.mrf.mxu0
    %v1987 = vadd.f32 %v1593, %v1986
    %v1988 = vpop.f32.mrf.mxu0
    %v1989 = vadd.f32 %v1593, %v1988
    %1990 = vmatmul.bf16.gmra.mxu0 %v1515
    %v1991 = vpop.f32.mrf.mxu0
    %v1992 = vadd.f32 %v1593, %v1991
    %v1993 = vpop.f32.mrf.mxu0
    %v1994 = vadd.f32 %v1593, %v1993
    %1995 = vmatmul.bf16.gmra.mxu0 %v1519
    %v1996 = vpop.f32.mrf.mxu0
    %v1997 = vadd.f32 %v1593, %v1996
    %v1998 = vpop.f32.mrf.mxu0
    %v1999 = vadd.f32 %v1593, %v1998
    %2000 = vmatmul.bf16.gmra.mxu0 %v1523
    %v2001 = vpop.f32.mrf.mxu0
    %v2002 = vadd.f32 %v1593, %v2001
    %v2003 = vpop.f32.mrf.mxu0
    %v2004 = vadd.f32 %v1593, %v2003
    %2005 = vdwg.mxu0
    %2006 = vmatpush.bf16.msra.mxu0 %v1819
    %2007 = vmatpush.bf16.msra.mxu0 %v1817
    %2008 = vmatpush.bf16.msra.mxu0 %v1815
    %2009 = vmatpush.bf16.msra.mxu0 %v1813
    %2010 = vmatpush.bf16.msra.mxu0 %v1811
    %2011 = vmatpush.bf16.msra.mxu0 %v1809
    %2012 = vmatpush.bf16.msra.mxu0 %v1807
    %2013 = vmatpush.bf16.msra.mxu0 %v1805
    %2014 = vmatmul.bf16.gmra.mxu0 %v1464
    %v2015 = vpop.f32.mrf.mxu0
    %v2016 = vadd.f32 %v1927, %v2015
    %v2017 = vpop.f32.mrf.mxu0
    %v2018 = vadd.f32 %v1929, %v2017
    %2019 = vmatmul.bf16.gmra.mxu0 %v1468
    %v2020 = vpop.f32.mrf.mxu0
    %v2021 = vadd.f32 %v1932, %v2020
    %v2022 = vpop.f32.mrf.mxu0
    %v2023 = vadd.f32 %v1934, %v2022
    %2024 = vmatmul.bf16.gmra.mxu0 %v1472
    %v2025 = vpop.f32.mrf.mxu0
    %v2026 = vadd.f32 %v1937, %v2025
    %v2027 = vpop.f32.mrf.mxu0
    %v2028 = vadd.f32 %v1939, %v2027
    %2029 = vmatmul.bf16.gmra.mxu0 %v1476
    %v2030 = vpop.f32.mrf.mxu0
    %v2031 = vadd.f32 %v1942, %v2030
    %v2032 = vpop.f32.mrf.mxu0
    %v2033 = vadd.f32 %v1944, %v2032
    %2034 = vmatmul.bf16.gmra.mxu0 %v1480
    %v2035 = vpop.f32.mrf.mxu0
    %v2036 = vadd.f32 %v1947, %v2035
    %v2037 = vpop.f32.mrf.mxu0
    %v2038 = vadd.f32 %v1949, %v2037
    %2039 = vmatmul.bf16.gmra.mxu0 %v1484
    %v2040 = vpop.f32.mrf.mxu0
    %v2041 = vadd.f32 %v1952, %v2040
    %v2042 = vpop.f32.mrf.mxu0
    %v2043 = vadd.f32 %v1954, %v2042
    %2044 = vmatmul.bf16.gmra.mxu0 %v1488
    %v2045 = vpop.f32.mrf.mxu0
    %v2046 = vadd.f32 %v1957, %v2045
    %v2047 = vpop.f32.mrf.mxu0
    %v2048 = vadd.f32 %v1959, %v2047
    %2049 = vmatmul.bf16.gmra.mxu0 %v1492
    %v2050 = vpop.f32.mrf.mxu0
    %v2051 = vadd.f32 %v1962, %v2050
    %v2052 = vpop.f32.mrf.mxu0
    %v2053 = vadd.f32 %v1964, %v2052
    %2054 = vmatmul.bf16.gmra.mxu0 %v1496
    %v2055 = vpop.f32.mrf.mxu0
    %v2056 = vadd.f32 %v1967, %v2055
    %v2057 = vpop.f32.mrf.mxu0
    %v2058 = vadd.f32 %v1969, %v2057
    %2059 = vmatmul.bf16.gmra.mxu0 %v1500
    %v2060 = vpop.f32.mrf.mxu0
    %v2061 = vadd.f32 %v1972, %v2060
    %v2062 = vpop.f32.mrf.mxu0
    %v2063 = vadd.f32 %v1974, %v2062
    %2064 = vmatmul.bf16.gmra.mxu0 %v1504
    %v2065 = vpop.f32.mrf.mxu0
    %v2066 = vadd.f32 %v1977, %v2065
    %v2067 = vpop.f32.mrf.mxu0
    %v2068 = vadd.f32 %v1979, %v2067
    %2069 = vmatmul.bf16.gmra.mxu0 %v1508
    %v2070 = vpop.f32.mrf.mxu0
    %v2071 = vadd.f32 %v1982, %v2070
    %v2072 = vpop.f32.mrf.mxu0
    %v2073 = vadd.f32 %v1984, %v2072
    %2074 = vmatmul.bf16.gmra.mxu0 %v1512
    %v2075 = vpop.f32.mrf.mxu0
    %v2076 = vadd.f32 %v1987, %v2075
    %v2077 = vpop.f32.mrf.mxu0
    %v2078 = vadd.f32 %v1989, %v2077
    %2079 = vmatmul.bf16.gmra.mxu0 %v1516
    %v2080 = vpop.f32.mrf.mxu0
    %v2081 = vadd.f32 %v1992, %v2080
    %v2082 = vpop.f32.mrf.mxu0
    %v2083 = vadd.f32 %v1994, %v2082
    %2084 = vmatmul.bf16.gmra.mxu0 %v1520
    %v2085 = vpop.f32.mrf.mxu0
    %v2086 = vadd.f32 %v1997, %v2085
    %v2087 = vpop.f32.mrf.mxu0
    %v2088 = vadd.f32 %v1999, %v2087
    %2089 = vmatmul.bf16.gmra.mxu0 %v1524
    %v2090 = vpop.f32.mrf.mxu0
    %v2091 = vadd.f32 %v2002, %v2090
    %v2092 = vpop.f32.mrf.mxu0
    %v2093 = vadd.f32 %v2004, %v2092
    %2094 = vdwg.mxu0
    %2095 = vmatpush.bf16.msra.mxu0 %v1835
    %2096 = vmatpush.bf16.msra.mxu0 %v1833
    %2097 = vmatpush.bf16.msra.mxu0 %v1831
    %2098 = vmatpush.bf16.msra.mxu0 %v1829
    %2099 = vmatpush.bf16.msra.mxu0 %v1827
    %2100 = vmatpush.bf16.msra.mxu0 %v1825
    %2101 = vmatpush.bf16.msra.mxu0 %v1823
    %2102 = vmatpush.bf16.msra.mxu0 %v1821
    %2103 = vmatmul.bf16.gmra.mxu0 %v1465
    %v2104 = vpop.f32.mrf.mxu0
    %v2105 = vadd.f32 %v2016, %v2104
    %v2106 = vpop.f32.mrf.mxu0
    %v2107 = vadd.f32 %v2018, %v2106
    %2108 = vmatmul.bf16.gmra.mxu0 %v1469
    %v2109 = vpop.f32.mrf.mxu0
    %v2110 = vadd.f32 %v2021, %v2109
    %v2111 = vpop.f32.mrf.mxu0
    %v2112 = vadd.f32 %v2023, %v2111
    %2113 = vmatmul.bf16.gmra.mxu0 %v1473
    %v2114 = vpop.f32.mrf.mxu0
    %v2115 = vadd.f32 %v2026, %v2114
    %v2116 = vpop.f32.mrf.mxu0
    %v2117 = vadd.f32 %v2028, %v2116
    %2118 = vmatmul.bf16.gmra.mxu0 %v1477
    %v2119 = vpop.f32.mrf.mxu0
    %v2120 = vadd.f32 %v2031, %v2119
    %v2121 = vpop.f32.mrf.mxu0
    %v2122 = vadd.f32 %v2033, %v2121
    %2123 = vmatmul.bf16.gmra.mxu0 %v1481
    %v2124 = vpop.f32.mrf.mxu0
    %v2125 = vadd.f32 %v2036, %v2124
    %v2126 = vpop.f32.mrf.mxu0
    %v2127 = vadd.f32 %v2038, %v2126
    %2128 = vmatmul.bf16.gmra.mxu0 %v1485
    %v2129 = vpop.f32.mrf.mxu0
    %v2130 = vadd.f32 %v2041, %v2129
    %v2131 = vpop.f32.mrf.mxu0
    %v2132 = vadd.f32 %v2043, %v2131
    %2133 = vmatmul.bf16.gmra.mxu0 %v1489
    %v2134 = vpop.f32.mrf.mxu0
    %v2135 = vadd.f32 %v2046, %v2134
    %v2136 = vpop.f32.mrf.mxu0
    %v2137 = vadd.f32 %v2048, %v2136
    %2138 = vmatmul.bf16.gmra.mxu0 %v1493
    %v2139 = vpop.f32.mrf.mxu0
    %v2140 = vadd.f32 %v2051, %v2139
    %v2141 = vpop.f32.mrf.mxu0
    %v2142 = vadd.f32 %v2053, %v2141
    %2143 = vmatmul.bf16.gmra.mxu0 %v1497
    %v2144 = vpop.f32.mrf.mxu0
    %v2145 = vadd.f32 %v2056, %v2144
    %v2146 = vpop.f32.mrf.mxu0
    %v2147 = vadd.f32 %v2058, %v2146
    %2148 = vmatmul.bf16.gmra.mxu0 %v1501
    %v2149 = vpop.f32.mrf.mxu0
    %v2150 = vadd.f32 %v2061, %v2149
    %v2151 = vpop.f32.mrf.mxu0
    %v2152 = vadd.f32 %v2063, %v2151
    %2153 = vmatmul.bf16.gmra.mxu0 %v1505
    %v2154 = vpop.f32.mrf.mxu0
    %v2155 = vadd.f32 %v2066, %v2154
    %v2156 = vpop.f32.mrf.mxu0
    %v2157 = vadd.f32 %v2068, %v2156
    %2158 = vmatmul.bf16.gmra.mxu0 %v1509
    %v2159 = vpop.f32.mrf.mxu0
    %v2160 = vadd.f32 %v2071, %v2159
    %v2161 = vpop.f32.mrf.mxu0
    %v2162 = vadd.f32 %v2073, %v2161
    %2163 = vmatmul.bf16.gmra.mxu0 %v1513
    %v2164 = vpop.f32.mrf.mxu0
    %v2165 = vadd.f32 %v2076, %v2164
    %v2166 = vpop.f32.mrf.mxu0
    %v2167 = vadd.f32 %v2078, %v2166
    %2168 = vmatmul.bf16.gmra.mxu0 %v1517
    %v2169 = vpop.f32.mrf.mxu0
    %v2170 = vadd.f32 %v2081, %v2169
    %v2171 = vpop.f32.mrf.mxu0
    %v2172 = vadd.f32 %v2083, %v2171
    %2173 = vmatmul.bf16.gmra.mxu0 %v1521
    %v2174 = vpop.f32.mrf.mxu0
    %v2175 = vadd.f32 %v2086, %v2174
    %v2176 = vpop.f32.mrf.mxu0
    %v2177 = vadd.f32 %v2088, %v2176
    %2178 = vmatmul.bf16.gmra.mxu0 %v1525
    %v2179 = vpop.f32.mrf.mxu0
    %v2180 = vadd.f32 %v2091, %v2179
    %v2181 = vpop.f32.mrf.mxu0
    %v2182 = vadd.f32 %v2093, %v2181
    %2183 = vdwg.mxu0
    %2184 = vmatpush.bf16.msra.mxu0 %v1851
    %2185 = vmatpush.bf16.msra.mxu0 %v1849
    %2186 = vmatpush.bf16.msra.mxu0 %v1847
    %2187 = vmatpush.bf16.msra.mxu0 %v1845
    %2188 = vmatpush.bf16.msra.mxu0 %v1843
    %2189 = vmatpush.bf16.msra.mxu0 %v1841
    %2190 = vmatpush.bf16.msra.mxu0 %v1839
    %2191 = vmatpush.bf16.msra.mxu0 %v1837
    %2192 = vmatmul.bf16.gmra.mxu0 %v1466
    %v2193 = vpop.f32.mrf.mxu0
    %v2194 = vadd.f32 %v2105, %v2193
    %v2195 = vpop.f32.mrf.mxu0
    %v2196 = vadd.f32 %v2107, %v2195
    %2197 = vmatmul.bf16.gmra.mxu0 %v1470
    %v2198 = vpop.f32.mrf.mxu0
    %v2199 = vadd.f32 %v2110, %v2198
    %v2200 = vpop.f32.mrf.mxu0
    %v2201 = vadd.f32 %v2112, %v2200
    %2202 = vmatmul.bf16.gmra.mxu0 %v1474
    %v2203 = vpop.f32.mrf.mxu0
    %v2204 = vadd.f32 %v2115, %v2203
    %v2205 = vpop.f32.mrf.mxu0
    %v2206 = vadd.f32 %v2117, %v2205
    %2207 = vmatmul.bf16.gmra.mxu0 %v1478
    %v2208 = vpop.f32.mrf.mxu0
    %v2209 = vadd.f32 %v2120, %v2208
    %v2210 = vpop.f32.mrf.mxu0
    %v2211 = vadd.f32 %v2122, %v2210
    %2212 = vmatmul.bf16.gmra.mxu0 %v1482
    %v2213 = vpop.f32.mrf.mxu0
    %v2214 = vadd.f32 %v2125, %v2213
    %v2215 = vpop.f32.mrf.mxu0
    %v2216 = vadd.f32 %v2127, %v2215
    %2217 = vmatmul.bf16.gmra.mxu0 %v1486
    %v2218 = vpop.f32.mrf.mxu0
    %v2219 = vadd.f32 %v2130, %v2218
    %v2220 = vpop.f32.mrf.mxu0
    %v2221 = vadd.f32 %v2132, %v2220
    %2222 = vmatmul.bf16.gmra.mxu0 %v1490
    %v2223 = vpop.f32.mrf.mxu0
    %v2224 = vadd.f32 %v2135, %v2223
    %v2225 = vpop.f32.mrf.mxu0
    %v2226 = vadd.f32 %v2137, %v2225
    %2227 = vmatmul.bf16.gmra.mxu0 %v1494
    %v2228 = vpop.f32.mrf.mxu0
    %v2229 = vadd.f32 %v2140, %v2228
    %v2230 = vpop.f32.mrf.mxu0
    %v2231 = vadd.f32 %v2142, %v2230
    %2232 = vmatmul.bf16.gmra.mxu0 %v1498
    %v2233 = vpop.f32.mrf.mxu0
    %v2234 = vadd.f32 %v2145, %v2233
    %v2235 = vpop.f32.mrf.mxu0
    %v2236 = vadd.f32 %v2147, %v2235
    %2237 = vmatmul.bf16.gmra.mxu0 %v1502
    %v2238 = vpop.f32.mrf.mxu0
    %v2239 = vadd.f32 %v2150, %v2238
    %v2240 = vpop.f32.mrf.mxu0
    %v2241 = vadd.f32 %v2152, %v2240
    %2242 = vmatmul.bf16.gmra.mxu0 %v1506
    %v2243 = vpop.f32.mrf.mxu0
    %v2244 = vadd.f32 %v2155, %v2243
    %v2245 = vpop.f32.mrf.mxu0
    %v2246 = vadd.f32 %v2157, %v2245
    %2247 = vmatmul.bf16.gmra.mxu0 %v1510
    %v2248 = vpop.f32.mrf.mxu0
    %v2249 = vadd.f32 %v2160, %v2248
    %v2250 = vpop.f32.mrf.mxu0
    %v2251 = vadd.f32 %v2162, %v2250
    %2252 = vmatmul.bf16.gmra.mxu0 %v1514
    %v2253 = vpop.f32.mrf.mxu0
    %v2254 = vadd.f32 %v2165, %v2253
    %v2255 = vpop.f32.mrf.mxu0
    %v2256 = vadd.f32 %v2167, %v2255
    %2257 = vmatmul.bf16.gmra.mxu0 %v1518
    %v2258 = vpop.f32.mrf.mxu0
    %v2259 = vadd.f32 %v2170, %v2258
    %v2260 = vpop.f32.mrf.mxu0
    %v2261 = vadd.f32 %v2172, %v2260
    %2262 = vmatmul.bf16.gmra.mxu0 %v1522
    %v2263 = vpop.f32.mrf.mxu0
    %v2264 = vadd.f32 %v2175, %v2263
    %v2265 = vpop.f32.mrf.mxu0
    %v2266 = vadd.f32 %v2177, %v2265
    %2267 = vmatmul.bf16.gmra.mxu0 %v1526
    %v2268 = vpop.f32.mrf.mxu0
    %v2269 = vadd.f32 %v2180, %v2268
    %v2270 = vpop.f32.mrf.mxu0
    %v2271 = vadd.f32 %v2182, %v2270
    %2272 = vdwg.mxu0
    %2273 = vmatpush.bf16.msra.mxu0 %v1804
    %2274 = vmatpush.bf16.msra.mxu0 %v1802
    %2275 = vmatpush.bf16.msra.mxu0 %v1800
    %2276 = vmatpush.bf16.msra.mxu0 %v1798
    %2277 = vmatpush.bf16.msra.mxu0 %v1796
    %2278 = vmatpush.bf16.msra.mxu0 %v1794
    %2279 = vmatpush.bf16.msra.mxu0 %v1792
    %2280 = vmatpush.bf16.msra.mxu0 %v1790
    %2281 = vmatmul.bf16.gmra.mxu0 %v1463
    %v2282 = vpop.f32.mrf.mxu0
    %v2283 = vadd.f32 %v1594, %v2282
    %v2284 = vpop.f32.mrf.mxu0
    %v2285 = vadd.f32 %v1594, %v2284
    %2286 = vmatmul.bf16.gmra.mxu0 %v1467
    %v2287 = vpop.f32.mrf.mxu0
    %v2288 = vadd.f32 %v1594, %v2287
    %v2289 = vpop.f32.mrf.mxu0
    %v2290 = vadd.f32 %v1594, %v2289
    %2291 = vmatmul.bf16.gmra.mxu0 %v1471
    %v2292 = vpop.f32.mrf.mxu0
    %v2293 = vadd.f32 %v1594, %v2292
    %v2294 = vpop.f32.mrf.mxu0
    %v2295 = vadd.f32 %v1594, %v2294
    %2296 = vmatmul.bf16.gmra.mxu0 %v1475
    %v2297 = vpop.f32.mrf.mxu0
    %v2298 = vadd.f32 %v1594, %v2297
    %v2299 = vpop.f32.mrf.mxu0
    %v2300 = vadd.f32 %v1594, %v2299
    %2301 = vmatmul.bf16.gmra.mxu0 %v1479
    %v2302 = vpop.f32.mrf.mxu0
    %v2303 = vadd.f32 %v1594, %v2302
    %v2304 = vpop.f32.mrf.mxu0
    %v2305 = vadd.f32 %v1594, %v2304
    %2306 = vmatmul.bf16.gmra.mxu0 %v1483
    %v2307 = vpop.f32.mrf.mxu0
    %v2308 = vadd.f32 %v1594, %v2307
    %v2309 = vpop.f32.mrf.mxu0
    %v2310 = vadd.f32 %v1594, %v2309
    %2311 = vmatmul.bf16.gmra.mxu0 %v1487
    %v2312 = vpop.f32.mrf.mxu0
    %v2313 = vadd.f32 %v1594, %v2312
    %v2314 = vpop.f32.mrf.mxu0
    %v2315 = vadd.f32 %v1594, %v2314
    %2316 = vmatmul.bf16.gmra.mxu0 %v1491
    %v2317 = vpop.f32.mrf.mxu0
    %v2318 = vadd.f32 %v1594, %v2317
    %v2319 = vpop.f32.mrf.mxu0
    %v2320 = vadd.f32 %v1594, %v2319
    %2321 = vmatmul.bf16.gmra.mxu0 %v1495
    %v2322 = vpop.f32.mrf.mxu0
    %v2323 = vadd.f32 %v1594, %v2322
    %v2324 = vpop.f32.mrf.mxu0
    %v2325 = vadd.f32 %v1594, %v2324
    %2326 = vmatmul.bf16.gmra.mxu0 %v1499
    %v2327 = vpop.f32.mrf.mxu0
    %v2328 = vadd.f32 %v1594, %v2327
    %v2329 = vpop.f32.mrf.mxu0
    %v2330 = vadd.f32 %v1594, %v2329
    %2331 = vmatmul.bf16.gmra.mxu0 %v1503
    %v2332 = vpop.f32.mrf.mxu0
    %v2333 = vadd.f32 %v1594, %v2332
    %v2334 = vpop.f32.mrf.mxu0
    %v2335 = vadd.f32 %v1594, %v2334
    %2336 = vmatmul.bf16.gmra.mxu0 %v1507
    %v2337 = vpop.f32.mrf.mxu0
    %v2338 = vadd.f32 %v1594, %v2337
    %v2339 = vpop.f32.mrf.mxu0
    %v2340 = vadd.f32 %v1594, %v2339
    %2341 = vmatmul.bf16.gmra.mxu0 %v1511
    %v2342 = vpop.f32.mrf.mxu0
    %v2343 = vadd.f32 %v1594, %v2342
    %v2344 = vpop.f32.mrf.mxu0
    %v2345 = vadd.f32 %v1594, %v2344
    %2346 = vmatmul.bf16.gmra.mxu0 %v1515
    %v2347 = vpop.f32.mrf.mxu0
    %v2348 = vadd.f32 %v1594, %v2347
    %v2349 = vpop.f32.mrf.mxu0
    %v2350 = vadd.f32 %v1594, %v2349
    %2351 = vmatmul.bf16.gmra.mxu0 %v1519
    %v2352 = vpop.f32.mrf.mxu0
    %v2353 = vadd.f32 %v1594, %v2352
    %v2354 = vpop.f32.mrf.mxu0
    %v2355 = vadd.f32 %v1594, %v2354
    %2356 = vmatmul.bf16.gmra.mxu0 %v1523
    %v2357 = vpop.f32.mrf.mxu0
    %v2358 = vadd.f32 %v1594, %v2357
    %v2359 = vpop.f32.mrf.mxu0
    %v2360 = vadd.f32 %v1594, %v2359
    %2361 = vdwg.mxu0
    %2362 = vmatpush.bf16.msra.mxu0 %v1820
    %2363 = vmatpush.bf16.msra.mxu0 %v1818
    %2364 = vmatpush.bf16.msra.mxu0 %v1816
    %2365 = vmatpush.bf16.msra.mxu0 %v1814
    %2366 = vmatpush.bf16.msra.mxu0 %v1812
    %2367 = vmatpush.bf16.msra.mxu0 %v1810
    %2368 = vmatpush.bf16.msra.mxu0 %v1808
    %2369 = vmatpush.bf16.msra.mxu0 %v1806
    %2370 = vmatmul.bf16.gmra.mxu0 %v1464
    %v2371 = vpop.f32.mrf.mxu0
    %v2372 = vadd.f32 %v2283, %v2371
    %v2373 = vpop.f32.mrf.mxu0
    %v2374 = vadd.f32 %v2285, %v2373
    %2375 = vmatmul.bf16.gmra.mxu0 %v1468
    %v2376 = vpop.f32.mrf.mxu0
    %v2377 = vadd.f32 %v2288, %v2376
    %v2378 = vpop.f32.mrf.mxu0
    %v2379 = vadd.f32 %v2290, %v2378
    %2380 = vmatmul.bf16.gmra.mxu0 %v1472
    %v2381 = vpop.f32.mrf.mxu0
    %v2382 = vadd.f32 %v2293, %v2381
    %v2383 = vpop.f32.mrf.mxu0
    %v2384 = vadd.f32 %v2295, %v2383
    %2385 = vmatmul.bf16.gmra.mxu0 %v1476
    %v2386 = vpop.f32.mrf.mxu0
    %v2387 = vadd.f32 %v2298, %v2386
    %v2388 = vpop.f32.mrf.mxu0
    %v2389 = vadd.f32 %v2300, %v2388
    %2390 = vmatmul.bf16.gmra.mxu0 %v1480
    %v2391 = vpop.f32.mrf.mxu0
    %v2392 = vadd.f32 %v2303, %v2391
    %v2393 = vpop.f32.mrf.mxu0
    %v2394 = vadd.f32 %v2305, %v2393
    %2395 = vmatmul.bf16.gmra.mxu0 %v1484
    %v2396 = vpop.f32.mrf.mxu0
    %v2397 = vadd.f32 %v2308, %v2396
    %v2398 = vpop.f32.mrf.mxu0
    %v2399 = vadd.f32 %v2310, %v2398
    %2400 = vmatmul.bf16.gmra.mxu0 %v1488
    %v2401 = vpop.f32.mrf.mxu0
    %v2402 = vadd.f32 %v2313, %v2401
    %v2403 = vpop.f32.mrf.mxu0
    %v2404 = vadd.f32 %v2315, %v2403
    %2405 = vmatmul.bf16.gmra.mxu0 %v1492
    %v2406 = vpop.f32.mrf.mxu0
    %v2407 = vadd.f32 %v2318, %v2406
    %v2408 = vpop.f32.mrf.mxu0
    %v2409 = vadd.f32 %v2320, %v2408
    %2410 = vmatmul.bf16.gmra.mxu0 %v1496
    %v2411 = vpop.f32.mrf.mxu0
    %v2412 = vadd.f32 %v2323, %v2411
    %v2413 = vpop.f32.mrf.mxu0
    %v2414 = vadd.f32 %v2325, %v2413
    %2415 = vmatmul.bf16.gmra.mxu0 %v1500
    %v2416 = vpop.f32.mrf.mxu0
    %v2417 = vadd.f32 %v2328, %v2416
    %v2418 = vpop.f32.mrf.mxu0
    %v2419 = vadd.f32 %v2330, %v2418
    %2420 = vmatmul.bf16.gmra.mxu0 %v1504
    %v2421 = vpop.f32.mrf.mxu0
    %v2422 = vadd.f32 %v2333, %v2421
    %v2423 = vpop.f32.mrf.mxu0
    %v2424 = vadd.f32 %v2335, %v2423
    %2425 = vmatmul.bf16.gmra.mxu0 %v1508
    %v2426 = vpop.f32.mrf.mxu0
    %v2427 = vadd.f32 %v2338, %v2426
    %v2428 = vpop.f32.mrf.mxu0
    %v2429 = vadd.f32 %v2340, %v2428
    %2430 = vmatmul.bf16.gmra.mxu0 %v1512
    %v2431 = vpop.f32.mrf.mxu0
    %v2432 = vadd.f32 %v2343, %v2431
    %v2433 = vpop.f32.mrf.mxu0
    %v2434 = vadd.f32 %v2345, %v2433
    %2435 = vmatmul.bf16.gmra.mxu0 %v1516
    %v2436 = vpop.f32.mrf.mxu0
    %v2437 = vadd.f32 %v2348, %v2436
    %v2438 = vpop.f32.mrf.mxu0
    %v2439 = vadd.f32 %v2350, %v2438
    %2440 = vmatmul.bf16.gmra.mxu0 %v1520
    %v2441 = vpop.f32.mrf.mxu0
    %v2442 = vadd.f32 %v2353, %v2441
    %v2443 = vpop.f32.mrf.mxu0
    %v2444 = vadd.f32 %v2355, %v2443
    %2445 = vmatmul.bf16.gmra.mxu0 %v1524
    %v2446 = vpop.f32.mrf.mxu0
    %v2447 = vadd.f32 %v2358, %v2446
    %v2448 = vpop.f32.mrf.mxu0
    %v2449 = vadd.f32 %v2360, %v2448
    %2450 = vdwg.mxu0
    %2451 = vmatpush.bf16.msra.mxu0 %v1836
    %2452 = vmatpush.bf16.msra.mxu0 %v1834
    %2453 = vmatpush.bf16.msra.mxu0 %v1832
    %2454 = vmatpush.bf16.msra.mxu0 %v1830
    %2455 = vmatpush.bf16.msra.mxu0 %v1828
    %2456 = vmatpush.bf16.msra.mxu0 %v1826
    %2457 = vmatpush.bf16.msra.mxu0 %v1824
    %2458 = vmatpush.bf16.msra.mxu0 %v1822
    %2459 = vmatmul.bf16.gmra.mxu0 %v1465
    %v2460 = vpop.f32.mrf.mxu0
    %v2461 = vadd.f32 %v2372, %v2460
    %v2462 = vpop.f32.mrf.mxu0
    %v2463 = vadd.f32 %v2374, %v2462
    %2464 = vmatmul.bf16.gmra.mxu0 %v1469
    %v2465 = vpop.f32.mrf.mxu0
    %v2466 = vadd.f32 %v2377, %v2465
    %v2467 = vpop.f32.mrf.mxu0
    %v2468 = vadd.f32 %v2379, %v2467
    %2469 = vmatmul.bf16.gmra.mxu0 %v1473
    %v2470 = vpop.f32.mrf.mxu0
    %v2471 = vadd.f32 %v2382, %v2470
    %v2472 = vpop.f32.mrf.mxu0
    %v2473 = vadd.f32 %v2384, %v2472
    %2474 = vmatmul.bf16.gmra.mxu0 %v1477
    %v2475 = vpop.f32.mrf.mxu0
    %v2476 = vadd.f32 %v2387, %v2475
    %v2477 = vpop.f32.mrf.mxu0
    %v2478 = vadd.f32 %v2389, %v2477
    %2479 = vmatmul.bf16.gmra.mxu0 %v1481
    %v2480 = vpop.f32.mrf.mxu0
    %v2481 = vadd.f32 %v2392, %v2480
    %v2482 = vpop.f32.mrf.mxu0
    %v2483 = vadd.f32 %v2394, %v2482
    %2484 = vmatmul.bf16.gmra.mxu0 %v1485
    %v2485 = vpop.f32.mrf.mxu0
    %v2486 = vadd.f32 %v2397, %v2485
    %v2487 = vpop.f32.mrf.mxu0
    %v2488 = vadd.f32 %v2399, %v2487
    %2489 = vmatmul.bf16.gmra.mxu0 %v1489
    %v2490 = vpop.f32.mrf.mxu0
    %v2491 = vadd.f32 %v2402, %v2490
    %v2492 = vpop.f32.mrf.mxu0
    %v2493 = vadd.f32 %v2404, %v2492
    %2494 = vmatmul.bf16.gmra.mxu0 %v1493
    %v2495 = vpop.f32.mrf.mxu0
    %v2496 = vadd.f32 %v2407, %v2495
    %v2497 = vpop.f32.mrf.mxu0
    %v2498 = vadd.f32 %v2409, %v2497
    %2499 = vmatmul.bf16.gmra.mxu0 %v1497
    %v2500 = vpop.f32.mrf.mxu0
    %v2501 = vadd.f32 %v2412, %v2500
    %v2502 = vpop.f32.mrf.mxu0
    %v2503 = vadd.f32 %v2414, %v2502
    %2504 = vmatmul.bf16.gmra.mxu0 %v1501
    %v2505 = vpop.f32.mrf.mxu0
    %v2506 = vadd.f32 %v2417, %v2505
    %v2507 = vpop.f32.mrf.mxu0
    %v2508 = vadd.f32 %v2419, %v2507
    %2509 = vmatmul.bf16.gmra.mxu0 %v1505
    %v2510 = vpop.f32.mrf.mxu0
    %v2511 = vadd.f32 %v2422, %v2510
    %v2512 = vpop.f32.mrf.mxu0
    %v2513 = vadd.f32 %v2424, %v2512
    %2514 = vmatmul.bf16.gmra.mxu0 %v1509
    %v2515 = vpop.f32.mrf.mxu0
    %v2516 = vadd.f32 %v2427, %v2515
    %v2517 = vpop.f32.mrf.mxu0
    %v2518 = vadd.f32 %v2429, %v2517
    %2519 = vmatmul.bf16.gmra.mxu0 %v1513
    %v2520 = vpop.f32.mrf.mxu0
    %v2521 = vadd.f32 %v2432, %v2520
    %v2522 = vpop.f32.mrf.mxu0
    %v2523 = vadd.f32 %v2434, %v2522
    %2524 = vmatmul.bf16.gmra.mxu0 %v1517
    %v2525 = vpop.f32.mrf.mxu0
    %v2526 = vadd.f32 %v2437, %v2525
    %v2527 = vpop.f32.mrf.mxu0
    %v2528 = vadd.f32 %v2439, %v2527
    %2529 = vmatmul.bf16.gmra.mxu0 %v1521
    %v2530 = vpop.f32.mrf.mxu0
    %v2531 = vadd.f32 %v2442, %v2530
    %v2532 = vpop.f32.mrf.mxu0
    %v2533 = vadd.f32 %v2444, %v2532
    %2534 = vmatmul.bf16.gmra.mxu0 %v1525
    %v2535 = vpop.f32.mrf.mxu0
    %v2536 = vadd.f32 %v2447, %v2535
    %v2537 = vpop.f32.mrf.mxu0
    %v2538 = vadd.f32 %v2449, %v2537
    %2539 = vdwg.mxu0
    %2540 = vmatpush.bf16.msra.mxu0 %v1852
    %2541 = vmatpush.bf16.msra.mxu0 %v1850
    %2542 = vmatpush.bf16.msra.mxu0 %v1848
    %2543 = vmatpush.bf16.msra.mxu0 %v1846
    %2544 = vmatpush.bf16.msra.mxu0 %v1844
    %2545 = vmatpush.bf16.msra.mxu0 %v1842
    %2546 = vmatpush.bf16.msra.mxu0 %v1840
    %2547 = vmatpush.bf16.msra.mxu0 %v1838
    %2548 = vmatmul.bf16.gmra.mxu0 %v1466
    %v2549 = vpop.f32.mrf.mxu0
    %v2550 = vadd.f32 %v2461, %v2549
    %v2551 = vpop.f32.mrf.mxu0
    %v2552 = vadd.f32 %v2463, %v2551
    %2553 = vmatmul.bf16.gmra.mxu0 %v1470
    %v2554 = vpop.f32.mrf.mxu0
    %v2555 = vadd.f32 %v2466, %v2554
    %v2556 = vpop.f32.mrf.mxu0
    %v2557 = vadd.f32 %v2468, %v2556
    %2558 = vmatmul.bf16.gmra.mxu0 %v1474
    %v2559 = vpop.f32.mrf.mxu0
    %v2560 = vadd.f32 %v2471, %v2559
    %v2561 = vpop.f32.mrf.mxu0
    %v2562 = vadd.f32 %v2473, %v2561
    %2563 = vmatmul.bf16.gmra.mxu0 %v1478
    %v2564 = vpop.f32.mrf.mxu0
    %v2565 = vadd.f32 %v2476, %v2564
    %v2566 = vpop.f32.mrf.mxu0
    %v2567 = vadd.f32 %v2478, %v2566
    %2568 = vmatmul.bf16.gmra.mxu0 %v1482
    %v2569 = vpop.f32.mrf.mxu0
    %v2570 = vadd.f32 %v2481, %v2569
    %v2571 = vpop.f32.mrf.mxu0
    %v2572 = vadd.f32 %v2483, %v2571
    %2573 = vmatmul.bf16.gmra.mxu0 %v1486
    %v2574 = vpop.f32.mrf.mxu0
    %v2575 = vadd.f32 %v2486, %v2574
    %v2576 = vpop.f32.mrf.mxu0
    %v2577 = vadd.f32 %v2488, %v2576
    %2578 = vmatmul.bf16.gmra.mxu0 %v1490
    %v2579 = vpop.f32.mrf.mxu0
    %v2580 = vadd.f32 %v2491, %v2579
    %v2581 = vpop.f32.mrf.mxu0
    %v2582 = vadd.f32 %v2493, %v2581
    %2583 = vmatmul.bf16.gmra.mxu0 %v1494
    %v2584 = vpop.f32.mrf.mxu0
    %v2585 = vadd.f32 %v2496, %v2584
    %v2586 = vpop.f32.mrf.mxu0
    %v2587 = vadd.f32 %v2498, %v2586
    %2588 = vmatmul.bf16.gmra.mxu0 %v1498
    %v2589 = vpop.f32.mrf.mxu0
    %v2590 = vadd.f32 %v2501, %v2589
    %v2591 = vpop.f32.mrf.mxu0
    %v2592 = vadd.f32 %v2503, %v2591
    %2593 = vmatmul.bf16.gmra.mxu0 %v1502
    %v2594 = vpop.f32.mrf.mxu0
    %v2595 = vadd.f32 %v2506, %v2594
    %v2596 = vpop.f32.mrf.mxu0
    %v2597 = vadd.f32 %v2508, %v2596
    %2598 = vmatmul.bf16.gmra.mxu0 %v1506
    %v2599 = vpop.f32.mrf.mxu0
    %v2600 = vadd.f32 %v2511, %v2599
    %v2601 = vpop.f32.mrf.mxu0
    %v2602 = vadd.f32 %v2513, %v2601
    %2603 = vmatmul.bf16.gmra.mxu0 %v1510
    %v2604 = vpop.f32.mrf.mxu0
    %v2605 = vadd.f32 %v2516, %v2604
    %v2606 = vpop.f32.mrf.mxu0
    %v2607 = vadd.f32 %v2518, %v2606
    %2608 = vmatmul.bf16.gmra.mxu0 %v1514
    %v2609 = vpop.f32.mrf.mxu0
    %v2610 = vadd.f32 %v2521, %v2609
    %v2611 = vpop.f32.mrf.mxu0
    %v2612 = vadd.f32 %v2523, %v2611
    %2613 = vmatmul.bf16.gmra.mxu0 %v1518
    %v2614 = vpop.f32.mrf.mxu0
    %v2615 = vadd.f32 %v2526, %v2614
    %v2616 = vpop.f32.mrf.mxu0
    %v2617 = vadd.f32 %v2528, %v2616
    %2618 = vmatmul.bf16.gmra.mxu0 %v1522
    %v2619 = vpop.f32.mrf.mxu0
    %v2620 = vadd.f32 %v2531, %v2619
    %v2621 = vpop.f32.mrf.mxu0
    %v2622 = vadd.f32 %v2533, %v2621
    %2623 = vmatmul.bf16.gmra.mxu0 %v1526
    %v2624 = vpop.f32.mrf.mxu0
    %v2625 = vadd.f32 %v2536, %v2624
    %v2626 = vpop.f32.mrf.mxu0
    %v2627 = vadd.f32 %v2538, %v2626
    %2628 = vdwg.mxu0
    %2629 = vst [vmem:[#allocation5] sm:$0xff] %v2194
    %2630 = vst [vmem:[#allocation5 + $0x8] sm:$0xff] %v2550
    %2631 = vst [vmem:[#allocation5 + $0x10] sm:$0xff] %v2196
    %2632 = vst [vmem:[#allocation5 + $0x18] sm:$0xff] %v2552
    %2633 = vst [vmem:[#allocation5 + $0x20] sm:$0xff] %v2199
    %2634 = vst [vmem:[#allocation5 + $0x28] sm:$0xff] %v2555
    %2635 = vst [vmem:[#allocation5 + $0x30] sm:$0xff] %v2201
    %2636 = vst [vmem:[#allocation5 + $0x38] sm:$0xff] %v2557
    %2637 = vst [vmem:[#allocation5 + $0x40] sm:$0xff] %v2204
    %2638 = vst [vmem:[#allocation5 + $0x48] sm:$0xff] %v2560
    %2639 = vst [vmem:[#allocation5 + $0x50] sm:$0xff] %v2206
    %2640 = vst [vmem:[#allocation5 + $0x58] sm:$0xff] %v2562
    %2641 = vst [vmem:[#allocation5 + $0x60] sm:$0xff] %v2209
    %2642 = vst [vmem:[#allocation5 + $0x68] sm:$0xff] %v2565
    %2643 = vst [vmem:[#allocation5 + $0x70] sm:$0xff] %v2211
    %2644 = vst [vmem:[#allocation5 + $0x78] sm:$0xff] %v2567
    %2645 = vst [vmem:[#allocation5 + $0x80] sm:$0xff] %v2214
    %2646 = vst [vmem:[#allocation5 + $0x88] sm:$0xff] %v2570
    %2647 = vst [vmem:[#allocation5 + $0x90] sm:$0xff] %v2216
    %2648 = vst [vmem:[#allocation5 + $0x98] sm:$0xff] %v2572
    %2649 = vst [vmem:[#allocation5 + $0xa0] sm:$0xff] %v2219
    %2650 = vst [vmem:[#allocation5 + $0xa8] sm:$0xff] %v2575
    %2651 = vst [vmem:[#allocation5 + $0xb0] sm:$0xff] %v2221
    %2652 = vst [vmem:[#allocation5 + $0xb8] sm:$0xff] %v2577
    %2653 = vst [vmem:[#allocation5 + $0xc0] sm:$0xff] %v2224
    %2654 = vst [vmem:[#allocation5 + $0xc8] sm:$0xff] %v2580
    %2655 = vst [vmem:[#allocation5 + $0xd0] sm:$0xff] %v2226
    %2656 = vst [vmem:[#allocation5 + $0xd8] sm:$0xff] %v2582
    %2657 = vst [vmem:[#allocation5 + $0xe0] sm:$0xff] %v2229
    %2658 = vst [vmem:[#allocation5 + $0xe8] sm:$0xff] %v2585
    %2659 = vst [vmem:[#allocation5 + $0xf0] sm:$0xff] %v2231
    %2660 = vst [vmem:[#allocation5 + $0xf8] sm:$0xff] %v2587
    %2661 = vst [vmem:[#allocation5 + $0x100] sm:$0xff] %v2234
    %2662 = vst [vmem:[#allocation5 + $0x108] sm:$0xff] %v2590
    %2663 = vst [vmem:[#allocation5 + $0x110] sm:$0xff] %v2236
    %2664 = vst [vmem:[#allocation5 + $0x118] sm:$0xff] %v2592
    %2665 = vst [vmem:[#allocation5 + $0x120] sm:$0xff] %v2239
    %2666 = vst [vmem:[#allocation5 + $0x128] sm:$0xff] %v2595
    %2667 = vst [vmem:[#allocation5 + $0x130] sm:$0xff] %v2241
    %2668 = vst [vmem:[#allocation5 + $0x138] sm:$0xff] %v2597
    %2669 = vst [vmem:[#allocation5 + $0x140] sm:$0xff] %v2244
    %2670 = vst [vmem:[#allocation5 + $0x148] sm:$0xff] %v2600
    %2671 = vst [vmem:[#allocation5 + $0x150] sm:$0xff] %v2246
    %2672 = vst [vmem:[#allocation5 + $0x158] sm:$0xff] %v2602
    %2673 = vst [vmem:[#allocation5 + $0x160] sm:$0xff] %v2249
    %2674 = vst [vmem:[#allocation5 + $0x168] sm:$0xff] %v2605
    %2675 = vst [vmem:[#allocation5 + $0x170] sm:$0xff] %v2251
    %2676 = vst [vmem:[#allocation5 + $0x178] sm:$0xff] %v2607
    %2677 = vst [vmem:[#allocation5 + $0x180] sm:$0xff] %v2254
    %2678 = vst [vmem:[#allocation5 + $0x188] sm:$0xff] %v2610
    %2679 = vst [vmem:[#allocation5 + $0x190] sm:$0xff] %v2256
    %2680 = vst [vmem:[#allocation5 + $0x198] sm:$0xff] %v2612
    %2681 = vst [vmem:[#allocation5 + $0x1a0] sm:$0xff] %v2259
    %2682 = vst [vmem:[#allocation5 + $0x1a8] sm:$0xff] %v2615
    %2683 = vst [vmem:[#allocation5 + $0x1b0] sm:$0xff] %v2261
    %2684 = vst [vmem:[#allocation5 + $0x1b8] sm:$0xff] %v2617
    %2685 = vst [vmem:[#allocation5 + $0x1c0] sm:$0xff] %v2264
    %2686 = vst [vmem:[#allocation5 + $0x1c8] sm:$0xff] %v2620
    %2687 = vst [vmem:[#allocation5 + $0x1d0] sm:$0xff] %v2266
    %2688 = vst [vmem:[#allocation5 + $0x1d8] sm:$0xff] %v2622
    %2689 = vst [vmem:[#allocation5 + $0x1e0] sm:$0xff] %v2269
    %2690 = vst [vmem:[#allocation5 + $0x1e8] sm:$0xff] %v2625
    %2691 = vst [vmem:[#allocation5 + $0x1f0] sm:$0xff] %v2271
    %2692 = vst [vmem:[#allocation5 + $0x1f8] sm:$0xff] %v2627
    // Predicated region
    $region26: #{feed_forward.1} parent=1 // pred_check
      _
    $region27: #{feed_forward.1} parent=1 // pred_check_branch
      %2694 = sbr.rel (0) target = $region29
    $region28: #{feed_forward.1} parent=1 // pred_region
      %2696 = vsyncadd [#allocation4], 0
      %s2697 = sshll.u32 [#allocation5], 4
      %s2698 = int_to_ptr.vmem [resolvable:$true] %s2697
      %s2699 = sshll.u32 %s5, 4
      %s2700 = int_to_ptr.hbm [resolvable:$true] %s2699
      %2705 = dma.vmem_to_hbm [thread:$0]  %s2698, 8192, %s2700, [#allocation4], 256, 256, 16
    $region29: #{feed_forward.1} parent=1 // pred_fallthru
      _
    // Predicated region
    $region30: #{feed_forward.1} parent=1 // pred_check
      _
    $region31: #{feed_forward.1} parent=1 // pred_check_branch
      %2707 = sbr.rel (0) target = $region33
    $region32: #{feed_forward.1} parent=1 // pred_region
      %2709 = dma.done [#allocation4], 8192
    $region33: #{feed_forward.1} parent=1 // pred_fallthru
      _
    %2710 = vsyncpa [#allocation3], 1
    %2711 = vsyncpa [#allocation4], 1

</llo_original>
